<compile_context>
chip_gen: v7x
topology: tpu7x:2x2x1
jax: 0.10.0
libtpu: 0.0.40
codegen_flags: <defaults>
</compile_context>

<pallas_src>
import math
import functools

import jax
import jax.numpy as jnp
import numpy as np
from jax import lax
from jax.experimental import pallas as pl
from jax.experimental.pallas import tpu as pltpu


# ----------------------------- in-kernel helpers -----------------------------

def _layernorm(x, g, b, eps=1e-5):
    mu = jnp.mean(x, axis=-1, keepdims=True)
    var = jnp.mean((x - mu) ** 2, axis=-1, keepdims=True)
    return (x - mu) * lax.rsqrt(var + eps) * g + b


def _gelu_exact(x):
    # nn.GELU() default (erf-based)
    return 0.5 * x * (1.0 + lax.erf(x * (1.0 / math.sqrt(2.0))))


# --------------------------------- fused kernel --------------------------------

def fused_forward_kernel(n_heads,
                         x_ref, bias_ref, mask_ref, enc_w_ref,
                         wqkv_ref, bqkv_ref, wp_ref, bp_ref,
                         ln1g_ref, ln1b_ref,
                         w1_ref, b1_ref, w2_ref, b2_ref,
                         ln2g_ref, ln2b_ref,
                         lng_ref, lnb_ref, headw_ref, headb_ref,
                         o_ref,
                         h_scratch):
    blk = pl.program_id(0)
    BT, D = h_scratch.shape
    Dh = D // n_heads
    scale = 1.0 / math.sqrt(Dh)
    # contraction over the last dim of both operands (no explicit k transpose)
    dn_qk = (((1,), (1,)), ((), ()))

    # ---- encoder_input_layer + (pre-folded) bias + positional encoding: first step only ----
    # TODO(synk): if h_dim is ever scaled up (>=256), cast matmul operands to bf16 with
    # preferred_element_type=f32 and switch the -1e30 mask fill to a finite bf16-safe min.
    @pl.when(blk == 0)
    def _():
        h_scratch[...] = (jnp.dot(x_ref[...], enc_w_ref[...],
                                  preferred_element_type=jnp.float32)
                          + bias_ref[...])

    h = h_scratch[...]                                           # (BT, D)

    # ---- causal multi-head self-attention on the flat (BT, D) slab ----
    # fused QKV projection: one MXU matmul, static lane slices
    qkv = (jnp.dot(h, wqkv_ref[0], preferred_element_type=jnp.float32)
           + bqkv_ref[0])                                        # (BT, 3D)
    q = qkv[:, 0 * D:1 * D]
    k = qkv[:, 1 * D:2 * D]
    v = qkv[:, 2 * D:3 * D]

    if n_heads == 1:
        s = (lax.dot_general(q, k, dn_qk, preferred_element_type=jnp.float32)
             * scale + mask_ref[...])                            # (BT, BT), block-diag causal
        m = jnp.max(s, axis=-1, keepdims=True)
        e = jnp.exp(s - m)
        p = e * pl.reciprocal(jnp.sum(e, axis=-1, keepdims=True), approx=True)
        attn = jnp.dot(p, v, preferred_element_type=jnp.float32)  # (BT, D)
    else:
        # TODO(synk): for n_heads > 1 a single batched contraction over a head axis would avoid
        # the per-head lane slices / concatenate; unused at n_heads=1.
        outs = []
        for hh in range(n_heads):
            sl = slice(hh * Dh, (hh + 1) * Dh)
            s = (lax.dot_general(q[:, sl], k[:, sl], dn_qk,
                                 preferred_element_type=jnp.float32)
                 * scale + mask_ref[...])
            m = jnp.max(s, axis=-1, keepdims=True)
            e = jnp.exp(s - m)
            p = e * pl.reciprocal(jnp.sum(e, axis=-1, keepdims=True), approx=True)
            outs.append(jnp.dot(p, v[:, sl], preferred_element_type=jnp.float32))
        attn = jnp.concatenate(outs, axis=-1)

    attn = (jnp.dot(attn, wp_ref[0], preferred_element_type=jnp.float32)
            + bp_ref[0])
    h = _layernorm(h + attn, ln1g_ref[0], ln1b_ref[0])

    # ---- MLP ----
    m1 = _gelu_exact(jnp.dot(h, w1_ref[0], preferred_element_type=jnp.float32)
                     + b1_ref[0])
    m2 = jnp.dot(m1, w2_ref[0], preferred_element_type=jnp.float32) + b2_ref[0]
    h = _layernorm(h + m2, ln2g_ref[0], ln2b_ref[0])

    h_scratch[...] = h                                           # carry to next block

    # ---- embed_ln + predict_rtg + sigmoid: last step only ----
    @pl.when(blk == pl.num_programs(0) - 1)
    def _():
        hf = _layernorm(h, lng_ref[...], lnb_ref[...])
        # D -> 1 projection as VPU multiply + lane reduce on the (BT, D) view
        y = jnp.sum(hf * headw_ref[...], axis=-1, keepdims=True) + headb_ref[...]
        o_ref[...] = jax.nn.sigmoid(y)                           # (BT, 1)


# -------------------------------- wrapper -------------------------------------

def transformer_network_forward(x, params, n_heads):
    B, T, Din = x.shape
    D = params["enc_w"].shape[1]
    blocks = params["blocks"]
    n_blocks = len(blocks)
    BT = B * T

    stack = lambda key: jnp.stack([blk[key] for blk in blocks], axis=0)

    # fuse Q/K/V weights per block, then stack over blocks
    wqkv = jnp.stack([jnp.concatenate([b["wq"], b["wk"], b["wv"]], axis=1)
                      for b in blocks], axis=0)                  # (n_blocks, D, 3D)
    bqkv = jnp.stack([jnp.concatenate([b["bq"], b["bk"], b["bv"]], axis=1)
                      for b in blocks], axis=0)                  # (n_blocks, 1, 3D)

    # batch fold in the wrapper (XLA metadata; avoids in-kernel sublane-crossing reshape)
    x2 = x.reshape(BT, Din)
    # encoder bias + positional encoding pre-folded into one (BT, D) bias array
    bias_full = jnp.tile(params["pe"] + params["enc_b"], (B, 1))

    # block-diagonal causal additive mask on the flat (BT, BT) score matrix
    r = jnp.arange(BT, dtype=jnp.int32)
    same_batch = (r[:, None] // T) == (r[None, :] // T)
    causal = r[None, :] <= r[:, None]
    mask = jnp.where(same_batch & causal, 0.0, -1e30).astype(jnp.float32)   # (BT, BT)

    head_w = params["head_w"].T                                  # (1, D)
    head_b = params["head_b"]                                    # (1, 1)

    resident = lambda shape: pl.BlockSpec(shape, lambda b: (0, 0))
    stacked = lambda s1, s2: pl.BlockSpec((1, s1, s2), lambda b: (b, 0, 0))

    in_specs = [
        resident((BT, Din)),        # x2
        resident((BT, D)),          # bias_full (enc_b + PE)
        resident((BT, BT)),         # additive mask
        resident((Din, D)),         # enc_w
        stacked(D, 3 * D),          # wqkv
        stacked(1, 3 * D),          # bqkv
        stacked(D, D),              # wp
        stacked(1, D),              # bp
        stacked(1, D),              # ln1g
        stacked(1, D),              # ln1b
        stacked(D, 4 * D),          # w1
        stacked(1, 4 * D),          # b1
        stacked(4 * D, D),          # w2
        stacked(1, D),              # b2
        stacked(1, D),              # ln2g
        stacked(1, D),              # ln2b
        resident((1, D)),           # ln_g (embed_ln)
        resident((1, D)),           # ln_b
        resident((1, D)),           # head_w
        resident((1, 1)),           # head_b
    ]

    # Block axis as a pipelined ("arbitrary") grid: per-block weights are double-buffered so the
    # next block's DMA overlaps the current block's compute; activations carry in VMEM scratch.
    # NOTE(v7x): at larger B, add a leading batch grid axis with ("parallel", "arbitrary") to use
    # both TensorCores; at B=2 the split overhead exceeds the work, so it is omitted here.
    out2d = pl.pallas_call(
        functools.partial(fused_forward_kernel, n_heads),
        out_shape=jax.ShapeDtypeStruct((BT, 1), jnp.float32),
        grid_spec=pltpu.PrefetchScalarGridSpec(
            num_scalar_prefetch=0,
            grid=(n_blocks,),
            in_specs=in_specs,
            out_specs=pl.BlockSpec((BT, 1), lambda b: (0, 0)),
            scratch_shapes=[pltpu.VMEM((BT, D), jnp.float32)]),
        compiler_params=pltpu.CompilerParams(
            dimension_semantics=("arbitrary",)),
    )(x2, bias_full, mask, params["enc_w"],
      wqkv, bqkv, stack("wp"), stack("bp"), stack("ln1g"), stack("ln1b"),
      stack("w1"), stack("b1"), stack("w2"), stack("b2"),
      stack("ln2g"), stack("ln2b"),
      params["ln_g"], params["ln_b"], head_w, head_b)

    return out2d.reshape(B, T, 1)


# --------------------------- deterministic params ------------------------------

def _linear_init(key, din, dout):
    k1, k2 = jax.random.split(key)
    bound = 1.0 / math.sqrt(din)
    w = jax.random.uniform(k1, (din, dout), jnp.float32, -bound, bound)
    b = jax.random.uniform(k2, (1, dout), jnp.float32, -bound, bound)
    return w, b


def init_params(key, input_dim, h_dim, n_blocks, T):
    k_enc, k_head, *k_blocks = jax.random.split(key, 2 + n_blocks)

    enc_w, enc_b = _linear_init(k_enc, input_dim, h_dim)
    head_w, head_b = _linear_init(k_head, h_dim, 1)

    # sinusoidal positional encoding (T, h_dim)
    pos = jnp.arange(T, dtype=jnp.float32)[:, None]
    div = jnp.exp(jnp.arange(0, h_dim, 2, dtype=jnp.float32)
                  * (-math.log(10000.0) / h_dim))
    pe = jnp.zeros((T, h_dim), jnp.float32)
    pe = pe.at[:, 0::2].set(jnp.sin(pos * div))
    pe = pe.at[:, 1::2].set(jnp.cos(pos * div))

    blocks = []
    for kb in k_blocks:
        ks = jax.random.split(kb, 6)
        wq, bq = _linear_init(ks[0], h_dim, h_dim)
        wk, bk = _linear_init(ks[1], h_dim, h_dim)
        wv, bv = _linear_init(ks[2], h_dim, h_dim)
        wp, bp = _linear_init(ks[3], h_dim, h_dim)
        w1, b1 = _linear_init(ks[4], h_dim, 4 * h_dim)
        w2, b2 = _linear_init(ks[5], 4 * h_dim, h_dim)
        blocks.append(dict(
            wq=wq, bq=bq, wk=wk, bk=bk, wv=wv, bv=bv, wp=wp, bp=bp,
            ln1g=jnp.ones((1, h_dim), jnp.float32), ln1b=jnp.zeros((1, h_dim), jnp.float32),
            w1=w1, b1=b1, w2=w2, b2=b2,
            ln2g=jnp.ones((1, h_dim), jnp.float32), ln2b=jnp.zeros((1, h_dim), jnp.float32),
        ))

    return dict(enc_w=enc_w, enc_b=enc_b, pe=pe, blocks=blocks,
                ln_g=jnp.ones((1, h_dim), jnp.float32),
                ln_b=jnp.zeros((1, h_dim), jnp.float32),
                head_w=head_w, head_b=head_b)


# ------------------------------ pure-JAX reference -----------------------------

def reference_forward(x, params, n_heads):
    def ln(x, g, b, eps=1e-5):
        mu = x.mean(-1, keepdims=True)
        var = ((x - mu) ** 2).mean(-1, keepdims=True)
        return (x - mu) / jnp.sqrt(var + eps) * g + b

    h = x @ params["enc_w"] + params["enc_b"] + params["pe"][None]
    B, T, D = h.shape
    Dh = D // n_heads
    causal = jnp.tril(jnp.ones((T, T), bool))
    for blk in params["blocks"]:
        q = (h @ blk["wq"] + blk["bq"]).reshape(B, T, n_heads, Dh).transpose(0, 2, 1, 3)
        k = (h @ blk["wk"] + blk["bk"]).reshape(B, T, n_heads, Dh).transpose(0, 2, 1, 3)
        v = (h @ blk["wv"] + blk["bv"]).reshape(B, T, n_heads, Dh).transpose(0, 2, 1, 3)
        s = (q @ k.transpose(0, 1, 3, 2)) / math.sqrt(Dh)
        s = jnp.where(causal, s, -1e30)
        p = jax.nn.softmax(s, axis=-1)
        a = (p @ v).transpose(0, 2, 1, 3).reshape(B, T, D)
        a = a @ blk["wp"] + blk["bp"]
        h = ln(h + a, blk["ln1g"], blk["ln1b"])
        m = jax.nn.gelu(h @ blk["w1"] + blk["b1"], approximate=False)
        m = m @ blk["w2"] + blk["b2"]
        h = ln(h + m, blk["ln2g"], blk["ln2b"])
    h = ln(h, params["ln_g"], params["ln_b"])
    return jax.nn.sigmoid(h @ params["head_w"] + params["head_b"])


# ----------------------------------- main --------------------------------------

if __name__ == "__main__":
    # small config consistent with the module: input_dim=6, h_dim=32, n_blocks=2,
    # context_len=4 -> seq_len = 3*context_len = 12, n_heads=1, batch=2
    B, context_len, input_dim, h_dim, n_blocks, n_heads = 2, 4, 6, 32, 2, 1
    T = 3 * context_len

    key = jax.random.PRNGKey(0)
    k_params, k_x = jax.random.split(key)
    params = init_params(k_params, input_dim, h_dim, n_blocks, T)
    x = jax.random.normal(k_x, (B, T, input_dim), jnp.float32)

    out = transformer_network_forward(x, params, n_heads)
    out = jax.block_until_ready(out)

    ref = jax.block_until_ready(reference_forward(x, params, n_heads))
    np.testing.assert_allclose(np.asarray(out), np.asarray(ref), rtol=2e-3, atol=2e-3)

    assert out.shape == (B, T, 1)
    print("KERNEL_OK")
</pallas_src>

<mosaic_0001>
module attributes {stable_mosaic.version = 11 : i64} {
  func.func @fused_forward_kernel(%arg0: i32, %arg1: memref<24x6xf32, #tpu.memory_space<vmem>>, %arg2: memref<24x32xf32, #tpu.memory_space<vmem>>, %arg3: memref<24x24xf32, #tpu.memory_space<vmem>>, %arg4: memref<6x32xf32, #tpu.memory_space<vmem>>, %arg5: memref<1x32x96xf32, #tpu.memory_space<vmem>>, %arg6: memref<1x1x96xf32, #tpu.memory_space<vmem>>, %arg7: memref<1x32x32xf32, #tpu.memory_space<vmem>>, %arg8: memref<1x1x32xf32, #tpu.memory_space<vmem>>, %arg9: memref<1x1x32xf32, #tpu.memory_space<vmem>>, %arg10: memref<1x1x32xf32, #tpu.memory_space<vmem>>, %arg11: memref<1x32x128xf32, #tpu.memory_space<vmem>>, %arg12: memref<1x1x128xf32, #tpu.memory_space<vmem>>, %arg13: memref<1x128x32xf32, #tpu.memory_space<vmem>>, %arg14: memref<1x1x32xf32, #tpu.memory_space<vmem>>, %arg15: memref<1x1x32xf32, #tpu.memory_space<vmem>>, %arg16: memref<1x1x32xf32, #tpu.memory_space<vmem>>, %arg17: memref<1x32xf32, #tpu.memory_space<vmem>>, %arg18: memref<1x32xf32, #tpu.memory_space<vmem>>, %arg19: memref<1x32xf32, #tpu.memory_space<vmem>>, %arg20: memref<1x1xf32, #tpu.memory_space<vmem>>, %arg21: memref<24x1xf32, #tpu.memory_space<vmem>>, %arg22: memref<24x32xf32, #tpu.memory_space<vmem>>) attributes {dimension_semantics = [#tpu.dimension_semantics<arbitrary>], iteration_bounds = array<i64: 2>, scalar_prefetch = 0 : i64, scratch_operands = 1 : i64, tpu.core_type = #tpu.core_type<tc>, window_params = [{pipeline_mode = #tpu.pipeline_mode<synchronous>, transform_indices = @transform_0, window_bounds = array<i64: 24, 6>}, {pipeline_mode = #tpu.pipeline_mode<synchronous>, transform_indices = @transform_1, window_bounds = array<i64: 24, 32>}, {pipeline_mode = #tpu.pipeline_mode<synchronous>, transform_indices = @transform_2, window_bounds = array<i64: 24, 24>}, {pipeline_mode = #tpu.pipeline_mode<synchronous>, transform_indices = @transform_3, window_bounds = array<i64: 6, 32>}, {transform_indices = @transform_4, window_bounds = array<i64: 1, 32, 96>}, {transform_indices = @transform_5, window_bounds = array<i64: 1, 1, 96>}, {transform_indices = @transform_6, window_bounds = array<i64: 1, 32, 32>}, {transform_indices = @transform_7, window_bounds = array<i64: 1, 1, 32>}, {transform_indices = @transform_8, window_bounds = array<i64: 1, 1, 32>}, {transform_indices = @transform_9, window_bounds = array<i64: 1, 1, 32>}, {transform_indices = @transform_10, window_bounds = array<i64: 1, 32, 128>}, {transform_indices = @transform_11, window_bounds = array<i64: 1, 1, 128>}, {transform_indices = @transform_12, window_bounds = array<i64: 1, 128, 32>}, {transform_indices = @transform_13, window_bounds = array<i64: 1, 1, 32>}, {transform_indices = @transform_14, window_bounds = array<i64: 1, 1, 32>}, {transform_indices = @transform_15, window_bounds = array<i64: 1, 1, 32>}, {pipeline_mode = #tpu.pipeline_mode<synchronous>, transform_indices = @transform_16, window_bounds = array<i64: 1, 32>}, {pipeline_mode = #tpu.pipeline_mode<synchronous>, transform_indices = @transform_17, window_bounds = array<i64: 1, 32>}, {pipeline_mode = #tpu.pipeline_mode<synchronous>, transform_indices = @transform_18, window_bounds = array<i64: 1, 32>}, {pipeline_mode = #tpu.pipeline_mode<synchronous>, transform_indices = @transform_19, window_bounds = array<i64: 1, 1>}, {pipeline_mode = #tpu.pipeline_mode<synchronous>, transform_indices = @transform_20, window_bounds = array<i64: 24, 1>}]} {
    %c0_i32 = arith.constant 0 : i32
    %0 = arith.cmpi eq, %arg0, %c0_i32 : i32
    %1 = arith.extui %0 : i1 to i32
    %c0_i32_0 = arith.constant 0 : i32
    %2 = arith.cmpi ne, %1, %c0_i32_0 : i32
    scf.if %2 {
      %c0_64 = arith.constant 0 : index
      %c0_65 = arith.constant 0 : index
      %117 = vector.load %arg1[%c0_64, %c0_65] : memref<24x6xf32, #tpu.memory_space<vmem>>, vector<24x6xf32>
      %c0_66 = arith.constant 0 : index
      %c0_67 = arith.constant 0 : index
      %118 = vector.load %arg4[%c0_66, %c0_67] : memref<6x32xf32, #tpu.memory_space<vmem>>, vector<6x32xf32>
      %cst_68 = arith.constant dense<0.000000e+00> : vector<24x32xf32>
      %119 = tpu.matmul %117, %118, %cst_68 {dimension_numbers = #tpu.dot_dimension_numbers<[1], [0], [0], [1], [0, 0, 1, 1], [], []>} : vector<24x6xf32>, vector<6x32xf32>, vector<24x32xf32> -> vector<24x32xf32>
      %c0_69 = arith.constant 0 : index
      %c0_70 = arith.constant 0 : index
      %120 = vector.load %arg2[%c0_69, %c0_70] : memref<24x32xf32, #tpu.memory_space<vmem>>, vector<24x32xf32>
      %121 = arith.addf %119, %120 : vector<24x32xf32>
      %c0_71 = arith.constant 0 : index
      %c0_72 = arith.constant 0 : index
      %122 = vector.load %arg22[%c0_71, %c0_72] : memref<24x32xf32, #tpu.memory_space<vmem>>, vector<24x32xf32>
      tpu.vector_store %arg22[%c0_71, %c0_72], %121 {strides = array<i32>} : memref<24x32xf32, #tpu.memory_space<vmem>>, vector<24x32xf32>,
    } else {
    }
    %c0 = arith.constant 0 : index
    %c0_1 = arith.constant 0 : index
    %3 = vector.load %arg22[%c0, %c0_1] : memref<24x32xf32, #tpu.memory_space<vmem>>, vector<24x32xf32>
    %c0_2 = arith.constant 0 : index
    %c0_3 = arith.constant 0 : index
    %c0_4 = arith.constant 0 : index
    %4 = vector.load %arg5[%c0_2, %c0_3, %c0_4] : memref<1x32x96xf32, #tpu.memory_space<vmem>>, vector<1x32x96xf32>
    %5 = vector.shape_cast %4 : vector<1x32x96xf32> to vector<32x96xf32>
    %cst = arith.constant dense<0.000000e+00> : vector<24x96xf32>
    %6 = tpu.matmul %3, %5, %cst {dimension_numbers = #tpu.dot_dimension_numbers<[1], [0], [0], [1], [0, 0, 1, 1], [], []>} : vector<24x32xf32>, vector<32x96xf32>, vector<24x96xf32> -> vector<24x96xf32>
    %c0_5 = arith.constant 0 : index
    %c0_6 = arith.constant 0 : index
    %c0_7 = arith.constant 0 : index
    %7 = vector.load %arg6[%c0_5, %c0_6, %c0_7] : memref<1x1x96xf32, #tpu.memory_space<vmem>>, vector<1x1x96xf32>
    %8 = vector.shape_cast %7 : vector<1x1x96xf32> to vector<1x96xf32>
    %9 = vector.broadcast %8 : vector<1x96xf32> to vector<24x96xf32>
    %10 = arith.addf %6, %9 : vector<24x96xf32>
    %11 = vector.extract_strided_slice %10 {offsets = [0, 0], sizes = [24, 32], strides = [1, 1]} : vector<24x96xf32> to vector<24x32xf32>
    %12 = vector.extract_strided_slice %10 {offsets = [0, 32], sizes = [24, 32], strides = [1, 1]} : vector<24x96xf32> to vector<24x32xf32>
    %13 = vector.extract_strided_slice %10 {offsets = [0, 64], sizes = [24, 32], strides = [1, 1]} : vector<24x96xf32> to vector<24x32xf32>
    %cst_8 = arith.constant dense<0.000000e+00> : vector<24x24xf32>
    %14 = tpu.matmul %11, %12, %cst_8 {dimension_numbers = #tpu.dot_dimension_numbers<[1], [1], [0], [0], [0, 0, 1, 0], [], []>} : vector<24x32xf32>, vector<24x32xf32>, vector<24x24xf32> -> vector<24x24xf32>
    %cst_9 = arith.constant 0.176776692 : f32
    %15 = vector.broadcast %cst_9 : f32 to vector<24x24xf32>
    %16 = arith.mulf %14, %15 : vector<24x24xf32>
    %c0_10 = arith.constant 0 : index
    %c0_11 = arith.constant 0 : index
    %17 = vector.load %arg3[%c0_10, %c0_11] : memref<24x24xf32, #tpu.memory_space<vmem>>, vector<24x24xf32>
    %18 = arith.addf %16, %17 : vector<24x24xf32>
    %cst_12 = arith.constant dense<0xFF800000> : vector<24xf32>
    %19 = vector.multi_reduction <maximumf>, %18, %cst_12 [1] : vector<24x24xf32> to vector<24xf32>
    %20 = vector.shape_cast %19 : vector<24xf32> to vector<24x1xf32>
    %21 = vector.broadcast %20 : vector<24x1xf32> to vector<24x24xf32>
    %22 = arith.subf %18, %21 : vector<24x24xf32>
    %23 = math.exp %22 : vector<24x24xf32>
    %cst_13 = arith.constant dense<0.000000e+00> : vector<24xf32>
    %24 = vector.multi_reduction <add>, %23, %cst_13 [1] : vector<24x24xf32> to vector<24xf32>
    %25 = vector.shape_cast %24 : vector<24xf32> to vector<24x1xf32>
    %26 = tpu.reciprocal %25 {approx = true} : vector<24x1xf32> -> vector<24x1xf32>
    %27 = vector.broadcast %26 : vector<24x1xf32> to vector<24x24xf32>
    %28 = arith.mulf %23, %27 : vector<24x24xf32>
    %cst_14 = arith.constant dense<0.000000e+00> : vector<24x32xf32>
    %29 = tpu.matmul %28, %13, %cst_14 {dimension_numbers = #tpu.dot_dimension_numbers<[1], [0], [0], [1], [0, 0, 1, 1], [], []>} : vector<24x24xf32>, vector<24x32xf32>, vector<24x32xf32> -> vector<24x32xf32>
    %c0_15 = arith.constant 0 : index
    %c0_16 = arith.constant 0 : index
    %c0_17 = arith.constant 0 : index
    %30 = vector.load %arg7[%c0_15, %c0_16, %c0_17] : memref<1x32x32xf32, #tpu.memory_space<vmem>>, vector<1x32x32xf32>
    %31 = vector.shape_cast %30 : vector<1x32x32xf32> to vector<32x32xf32>
    %cst_18 = arith.constant dense<0.000000e+00> : vector<24x32xf32>
    %32 = tpu.matmul %29, %31, %cst_18 {dimension_numbers = #tpu.dot_dimension_numbers<[1], [0], [0], [1], [0, 0, 1, 1], [], []>} : vector<24x32xf32>, vector<32x32xf32>, vector<24x32xf32> -> vector<24x32xf32>
    %c0_19 = arith.constant 0 : index
    %c0_20 = arith.constant 0 : index
    %c0_21 = arith.constant 0 : index
    %33 = vector.load %arg8[%c0_19, %c0_20, %c0_21] : memref<1x1x32xf32, #tpu.memory_space<vmem>>, vector<1x1x32xf32>
    %34 = vector.shape_cast %33 : vector<1x1x32xf32> to vector<1x32xf32>
    %35 = vector.broadcast %34 : vector<1x32xf32> to vector<24x32xf32>
    %36 = arith.addf %32, %35 : vector<24x32xf32>
    %37 = arith.addf %3, %36 : vector<24x32xf32>
    %c0_22 = arith.constant 0 : index
    %c0_23 = arith.constant 0 : index
    %c0_24 = arith.constant 0 : index
    %38 = vector.load %arg9[%c0_22, %c0_23, %c0_24] : memref<1x1x32xf32, #tpu.memory_space<vmem>>, vector<1x1x32xf32>
    %39 = vector.shape_cast %38 : vector<1x1x32xf32> to vector<1x32xf32>
    %c0_25 = arith.constant 0 : index
    %c0_26 = arith.constant 0 : index
    %c0_27 = arith.constant 0 : index
    %40 = vector.load %arg10[%c0_25, %c0_26, %c0_27] : memref<1x1x32xf32, #tpu.memory_space<vmem>>, vector<1x1x32xf32>
    %41 = vector.shape_cast %40 : vector<1x1x32xf32> to vector<1x32xf32>
    %cst_28 = arith.constant dense<0.000000e+00> : vector<24xf32>
    %42 = vector.multi_reduction <add>, %37, %cst_28 [1] : vector<24x32xf32> to vector<24xf32>
    %43 = vector.shape_cast %42 : vector<24xf32> to vector<24x1xf32>
    %cst_29 = arith.constant 3.200000e+01 : f32
    %44 = vector.broadcast %cst_29 : f32 to vector<24x1xf32>
    %45 = arith.divf %43, %44 : vector<24x1xf32>
    %46 = vector.broadcast %45 : vector<24x1xf32> to vector<24x32xf32>
    %47 = arith.subf %37, %46 : vector<24x32xf32>
    %48 = arith.mulf %47, %47 : vector<24x32xf32>
    %cst_30 = arith.constant dense<0.000000e+00> : vector<24xf32>
    %49 = vector.multi_reduction <add>, %48, %cst_30 [1] : vector<24x32xf32> to vector<24xf32>
    %50 = vector.shape_cast %49 : vector<24xf32> to vector<24x1xf32>
    %cst_31 = arith.constant 3.200000e+01 : f32
    %51 = vector.broadcast %cst_31 : f32 to vector<24x1xf32>
    %52 = arith.divf %50, %51 : vector<24x1xf32>
    %53 = vector.broadcast %45 : vector<24x1xf32> to vector<24x32xf32>
    %54 = arith.subf %37, %53 : vector<24x32xf32>
    %cst_32 = arith.constant 9.99999974E-6 : f32
    %55 = vector.broadcast %cst_32 : f32 to vector<24x1xf32>
    %56 = arith.addf %52, %55 : vector<24x1xf32>
    %57 = math.rsqrt %56 : vector<24x1xf32>
    %58 = vector.broadcast %57 : vector<24x1xf32> to vector<24x32xf32>
    %59 = arith.mulf %54, %58 : vector<24x32xf32>
    %60 = vector.broadcast %39 : vector<1x32xf32> to vector<24x32xf32>
    %61 = arith.mulf %59, %60 : vector<24x32xf32>
    %62 = vector.broadcast %41 : vector<1x32xf32> to vector<24x32xf32>
    %63 = arith.addf %61, %62 : vector<24x32xf32>
    %c0_33 = arith.constant 0 : index
    %c0_34 = arith.constant 0 : index
    %c0_35 = arith.constant 0 : index
    %64 = vector.load %arg11[%c0_33, %c0_34, %c0_35] : memref<1x32x128xf32, #tpu.memory_space<vmem>>, vector<1x32x128xf32>
    %65 = vector.shape_cast %64 : vector<1x32x128xf32> to vector<32x128xf32>
    %cst_36 = arith.constant dense<0.000000e+00> : vector<24x128xf32>
    %66 = tpu.matmul %63, %65, %cst_36 {dimension_numbers = #tpu.dot_dimension_numbers<[1], [0], [0], [1], [0, 0, 1, 1], [], []>} : vector<24x32xf32>, vector<32x128xf32>, vector<24x128xf32> -> vector<24x128xf32>
    %c0_37 = arith.constant 0 : index
    %c0_38 = arith.constant 0 : index
    %c0_39 = arith.constant 0 : index
    %67 = vector.load %arg12[%c0_37, %c0_38, %c0_39] : memref<1x1x128xf32, #tpu.memory_space<vmem>>, vector<1x1x128xf32>
    %68 = vector.shape_cast %67 : vector<1x1x128xf32> to vector<1x128xf32>
    %69 = vector.broadcast %68 : vector<1x128xf32> to vector<24x128xf32>
    %70 = arith.addf %66, %69 : vector<24x128xf32>
    %cst_40 = arith.constant 5.000000e-01 : f32
    %71 = vector.broadcast %cst_40 : f32 to vector<24x128xf32>
    %72 = arith.mulf %71, %70 : vector<24x128xf32>
    %cst_41 = arith.constant 0.707106769 : f32
    %73 = vector.broadcast %cst_41 : f32 to vector<24x128xf32>
    %74 = arith.mulf %70, %73 : vector<24x128xf32>
    %75 = math.erf %74 : vector<24x128xf32>
    %cst_42 = arith.constant 1.000000e+00 : f32
    %76 = vector.broadcast %cst_42 : f32 to vector<24x128xf32>
    %77 = arith.addf %76, %75 : vector<24x128xf32>
    %78 = arith.mulf %72, %77 : vector<24x128xf32>
    %c0_43 = arith.constant 0 : index
    %c0_44 = arith.constant 0 : index
    %c0_45 = arith.constant 0 : index
    %79 = vector.load %arg13[%c0_43, %c0_44, %c0_45] : memref<1x128x32xf32, #tpu.memory_space<vmem>>, vector<1x128x32xf32>
    %80 = vector.shape_cast %79 : vector<1x128x32xf32> to vector<128x32xf32>
    %cst_46 = arith.constant dense<0.000000e+00> : vector<24x32xf32>
    %81 = tpu.matmul %78, %80, %cst_46 {dimension_numbers = #tpu.dot_dimension_numbers<[1], [0], [0], [1], [0, 0, 1, 1], [], []>} : vector<24x128xf32>, vector<128x32xf32>, vector<24x32xf32> -> vector<24x32xf32>
    %c0_47 = arith.constant 0 : index
    %c0_48 = arith.constant 0 : index
    %c0_49 = arith.constant 0 : index
    %82 = vector.load %arg14[%c0_47, %c0_48, %c0_49] : memref<1x1x32xf32, #tpu.memory_space<vmem>>, vector<1x1x32xf32>
    %83 = vector.shape_cast %82 : vector<1x1x32xf32> to vector<1x32xf32>
    %84 = vector.broadcast %83 : vector<1x32xf32> to vector<24x32xf32>
    %85 = arith.addf %81, %84 : vector<24x32xf32>
    %86 = arith.addf %63, %85 : vector<24x32xf32>
    %c0_50 = arith.constant 0 : index
    %c0_51 = arith.constant 0 : index
    %c0_52 = arith.constant 0 : index
    %87 = vector.load %arg15[%c0_50, %c0_51, %c0_52] : memref<1x1x32xf32, #tpu.memory_space<vmem>>, vector<1x1x32xf32>
    %88 = vector.shape_cast %87 : vector<1x1x32xf32> to vector<1x32xf32>
    %c0_53 = arith.constant 0 : index
    %c0_54 = arith.constant 0 : index
    %c0_55 = arith.constant 0 : index
    %89 = vector.load %arg16[%c0_53, %c0_54, %c0_55] : memref<1x1x32xf32, #tpu.memory_space<vmem>>, vector<1x1x32xf32>
    %90 = vector.shape_cast %89 : vector<1x1x32xf32> to vector<1x32xf32>
    %cst_56 = arith.constant dense<0.000000e+00> : vector<24xf32>
    %91 = vector.multi_reduction <add>, %86, %cst_56 [1] : vector<24x32xf32> to vector<24xf32>
    %92 = vector.shape_cast %91 : vector<24xf32> to vector<24x1xf32>
    %cst_57 = arith.constant 3.200000e+01 : f32
    %93 = vector.broadcast %cst_57 : f32 to vector<24x1xf32>
    %94 = arith.divf %92, %93 : vector<24x1xf32>
    %95 = vector.broadcast %94 : vector<24x1xf32> to vector<24x32xf32>
    %96 = arith.subf %86, %95 : vector<24x32xf32>
    %97 = arith.mulf %96, %96 : vector<24x32xf32>
    %cst_58 = arith.constant dense<0.000000e+00> : vector<24xf32>
    %98 = vector.multi_reduction <add>, %97, %cst_58 [1] : vector<24x32xf32> to vector<24xf32>
    %99 = vector.shape_cast %98 : vector<24xf32> to vector<24x1xf32>
    %cst_59 = arith.constant 3.200000e+01 : f32
    %100 = vector.broadcast %cst_59 : f32 to vector<24x1xf32>
    %101 = arith.divf %99, %100 : vector<24x1xf32>
    %102 = vector.broadcast %94 : vector<24x1xf32> to vector<24x32xf32>
    %103 = arith.subf %86, %102 : vector<24x32xf32>
    %cst_60 = arith.constant 9.99999974E-6 : f32
    %104 = vector.broadcast %cst_60 : f32 to vector<24x1xf32>
    %105 = arith.addf %101, %104 : vector<24x1xf32>
    %106 = math.rsqrt %105 : vector<24x1xf32>
    %107 = vector.broadcast %106 : vector<24x1xf32> to vector<24x32xf32>
    %108 = arith.mulf %103, %107 : vector<24x32xf32>
    %109 = vector.broadcast %88 : vector<1x32xf32> to vector<24x32xf32>
    %110 = arith.mulf %108, %109 : vector<24x32xf32>
    %111 = vector.broadcast %90 : vector<1x32xf32> to vector<24x32xf32>
    %112 = arith.addf %110, %111 : vector<24x32xf32>
    %c0_61 = arith.constant 0 : index
    %c0_62 = arith.constant 0 : index
    %113 = vector.load %arg22[%c0_61, %c0_62] : memref<24x32xf32, #tpu.memory_space<vmem>>, vector<24x32xf32>
    tpu.vector_store %arg22[%c0_61, %c0_62], %112 {strides = array<i32>} : memref<24x32xf32, #tpu.memory_space<vmem>>, vector<24x32xf32>,
    %c1_i32 = arith.constant 1 : i32
    %114 = arith.cmpi eq, %arg0, %c1_i32 : i32
    %115 = arith.extui %114 : i1 to i32
    %c0_i32_63 = arith.constant 0 : i32
    %116 = arith.cmpi ne, %115, %c0_i32_63 : i32
    scf.if %116 {
      %c0_64 = arith.constant 0 : index
      %c0_65 = arith.constant 0 : index
      %117 = vector.load %arg17[%c0_64, %c0_65] : memref<1x32xf32, #tpu.memory_space<vmem>>, vector<1x32xf32>
      %c0_66 = arith.constant 0 : index
      %c0_67 = arith.constant 0 : index
      %118 = vector.load %arg18[%c0_66, %c0_67] : memref<1x32xf32, #tpu.memory_space<vmem>>, vector<1x32xf32>
      %cst_68 = arith.constant dense<0.000000e+00> : vector<24xf32>
      %119 = vector.multi_reduction <add>, %112, %cst_68 [1] : vector<24x32xf32> to vector<24xf32>
      %120 = vector.shape_cast %119 : vector<24xf32> to vector<24x1xf32>
      %cst_69 = arith.constant 3.200000e+01 : f32
      %121 = vector.broadcast %cst_69 : f32 to vector<24x1xf32>
      %122 = arith.divf %120, %121 : vector<24x1xf32>
      %123 = vector.broadcast %122 : vector<24x1xf32> to vector<24x32xf32>
      %124 = arith.subf %112, %123 : vector<24x32xf32>
      %125 = arith.mulf %124, %124 : vector<24x32xf32>
      %cst_70 = arith.constant dense<0.000000e+00> : vector<24xf32>
      %126 = vector.multi_reduction <add>, %125, %cst_70 [1] : vector<24x32xf32> to vector<24xf32>
      %127 = vector.shape_cast %126 : vector<24xf32> to vector<24x1xf32>
      %cst_71 = arith.constant 3.200000e+01 : f32
      %128 = vector.broadcast %cst_71 : f32 to vector<24x1xf32>
      %129 = arith.divf %127, %128 : vector<24x1xf32>
      %130 = vector.broadcast %122 : vector<24x1xf32> to vector<24x32xf32>
      %131 = arith.subf %112, %130 : vector<24x32xf32>
      %cst_72 = arith.constant 9.99999974E-6 : f32
      %132 = vector.broadcast %cst_72 : f32 to vector<24x1xf32>
      %133 = arith.addf %129, %132 : vector<24x1xf32>
      %134 = math.rsqrt %133 : vector<24x1xf32>
      %135 = vector.broadcast %134 : vector<24x1xf32> to vector<24x32xf32>
      %136 = arith.mulf %131, %135 : vector<24x32xf32>
      %137 = vector.broadcast %117 : vector<1x32xf32> to vector<24x32xf32>
      %138 = arith.mulf %136, %137 : vector<24x32xf32>
      %139 = vector.broadcast %118 : vector<1x32xf32> to vector<24x32xf32>
      %140 = arith.addf %138, %139 : vector<24x32xf32>
      %c0_73 = arith.constant 0 : index
      %c0_74 = arith.constant 0 : index
      %141 = vector.load %arg19[%c0_73, %c0_74] : memref<1x32xf32, #tpu.memory_space<vmem>>, vector<1x32xf32>
      %142 = vector.broadcast %141 : vector<1x32xf32> to vector<24x32xf32>
      %143 = arith.mulf %140, %142 : vector<24x32xf32>
      %cst_75 = arith.constant dense<0.000000e+00> : vector<24xf32>
      %144 = vector.multi_reduction <add>, %143, %cst_75 [1] : vector<24x32xf32> to vector<24xf32>
      %145 = vector.shape_cast %144 : vector<24xf32> to vector<24x1xf32>
      %c0_76 = arith.constant 0 : index
      %c0_77 = arith.constant 0 : index
      %146 = vector.load %arg20[%c0_76, %c0_77] : memref<1x1xf32, #tpu.memory_space<vmem>>, vector<1x1xf32>
      %147 = vector.broadcast %146 : vector<1x1xf32> to vector<24x1xf32>
      %148 = arith.addf %145, %147 : vector<24x1xf32>
      %149 = arith.negf %148 : vector<24x1xf32>
      %150 = math.exp %149 : vector<24x1xf32>
      %cst_78 = arith.constant 1.000000e+00 : f32
      %151 = vector.broadcast %cst_78 : f32 to vector<24x1xf32>
      %152 = arith.addf %151, %150 : vector<24x1xf32>
      %153 = arith.divf %151, %152 : vector<24x1xf32>
      %c0_79 = arith.constant 0 : index
      %c0_80 = arith.constant 0 : index
      %154 = vector.load %arg21[%c0_79, %c0_80] : memref<24x1xf32, #tpu.memory_space<vmem>>, vector<24x1xf32>
      tpu.vector_store %arg21[%c0_79, %c0_80], %153 {strides = array<i32>} : memref<24x1xf32, #tpu.memory_space<vmem>>, vector<24x1xf32>,
    } else {
    }
    return
  }
  func.func @transform_0(%arg0: i32) -> (i32, i32) {
    %c0_i32 = arith.constant 0 : i32
    %c0_i32_0 = arith.constant 0 : i32
    %c0_i32_1 = arith.constant 0 : i32
    return %c0_i32, %c0_i32_0 : i32, i32
  }
  func.func @transform_1(%arg0: i32) -> (i32, i32) {
    %c0_i32 = arith.constant 0 : i32
    %c0_i32_0 = arith.constant 0 : i32
    %c0_i32_1 = arith.constant 0 : i32
    return %c0_i32, %c0_i32_0 : i32, i32
  }
  func.func @transform_2(%arg0: i32) -> (i32, i32) {
    %c0_i32 = arith.constant 0 : i32
    %c0_i32_0 = arith.constant 0 : i32
    %c0_i32_1 = arith.constant 0 : i32
    return %c0_i32, %c0_i32_0 : i32, i32
  }
  func.func @transform_3(%arg0: i32) -> (i32, i32) {
    %c0_i32 = arith.constant 0 : i32
    %c0_i32_0 = arith.constant 0 : i32
    %c0_i32_1 = arith.constant 0 : i32
    return %c0_i32, %c0_i32_0 : i32, i32
  }
  func.func @transform_4(%arg0: i32) -> (i32, i32, i32) {
    %c0_i32 = arith.constant 0 : i32
    %c0_i32_0 = arith.constant 0 : i32
    %c0_i32_1 = arith.constant 0 : i32
    return %arg0, %c0_i32, %c0_i32_0 : i32, i32, i32
  }
  func.func @transform_5(%arg0: i32) -> (i32, i32, i32) {
    %c0_i32 = arith.constant 0 : i32
    %c0_i32_0 = arith.constant 0 : i32
    %c0_i32_1 = arith.constant 0 : i32
    return %arg0, %c0_i32, %c0_i32_0 : i32, i32, i32
  }
  func.func @transform_6(%arg0: i32) -> (i32, i32, i32) {
    %c0_i32 = arith.constant 0 : i32
    %c0_i32_0 = arith.constant 0 : i32
    %c0_i32_1 = arith.constant 0 : i32
    return %arg0, %c0_i32, %c0_i32_0 : i32, i32, i32
  }
  func.func @transform_7(%arg0: i32) -> (i32, i32, i32) {
    %c0_i32 = arith.constant 0 : i32
    %c0_i32_0 = arith.constant 0 : i32
    %c0_i32_1 = arith.constant 0 : i32
    return %arg0, %c0_i32, %c0_i32_0 : i32, i32, i32
  }
  func.func @transform_8(%arg0: i32) -> (i32, i32, i32) {
    %c0_i32 = arith.constant 0 : i32
    %c0_i32_0 = arith.constant 0 : i32
    %c0_i32_1 = arith.constant 0 : i32
    return %arg0, %c0_i32, %c0_i32_0 : i32, i32, i32
  }
  func.func @transform_9(%arg0: i32) -> (i32, i32, i32) {
    %c0_i32 = arith.constant 0 : i32
    %c0_i32_0 = arith.constant 0 : i32
    %c0_i32_1 = arith.constant 0 : i32
    return %arg0, %c0_i32, %c0_i32_0 : i32, i32, i32
  }
  func.func @transform_10(%arg0: i32) -> (i32, i32, i32) {
    %c0_i32 = arith.constant 0 : i32
    %c0_i32_0 = arith.constant 0 : i32
    %c0_i32_1 = arith.constant 0 : i32
    return %arg0, %c0_i32, %c0_i32_0 : i32, i32, i32
  }
  func.func @transform_11(%arg0: i32) -> (i32, i32, i32) {
    %c0_i32 = arith.constant 0 : i32
    %c0_i32_0 = arith.constant 0 : i32
    %c0_i32_1 = arith.constant 0 : i32
    return %arg0, %c0_i32, %c0_i32_0 : i32, i32, i32
  }
  func.func @transform_12(%arg0: i32) -> (i32, i32, i32) {
    %c0_i32 = arith.constant 0 : i32
    %c0_i32_0 = arith.constant 0 : i32
    %c0_i32_1 = arith.constant 0 : i32
    return %arg0, %c0_i32, %c0_i32_0 : i32, i32, i32
  }
  func.func @transform_13(%arg0: i32) -> (i32, i32, i32) {
    %c0_i32 = arith.constant 0 : i32
    %c0_i32_0 = arith.constant 0 : i32
    %c0_i32_1 = arith.constant 0 : i32
    return %arg0, %c0_i32, %c0_i32_0 : i32, i32, i32
  }
  func.func @transform_14(%arg0: i32) -> (i32, i32, i32) {
    %c0_i32 = arith.constant 0 : i32
    %c0_i32_0 = arith.constant 0 : i32
    %c0_i32_1 = arith.constant 0 : i32
    return %arg0, %c0_i32, %c0_i32_0 : i32, i32, i32
  }
  func.func @transform_15(%arg0: i32) -> (i32, i32, i32) {
    %c0_i32 = arith.constant 0 : i32
    %c0_i32_0 = arith.constant 0 : i32
    %c0_i32_1 = arith.constant 0 : i32
    return %arg0, %c0_i32, %c0_i32_0 : i32, i32, i32
  }
  func.func @transform_16(%arg0: i32) -> (i32, i32) {
    %c0_i32 = arith.constant 0 : i32
    %c0_i32_0 = arith.constant 0 : i32
    %c0_i32_1 = arith.constant 0 : i32
    return %c0_i32, %c0_i32_0 : i32, i32
  }
  func.func @transform_17(%arg0: i32) -> (i32, i32) {
    %c0_i32 = arith.constant 0 : i32
    %c0_i32_0 = arith.constant 0 : i32
    %c0_i32_1 = arith.constant 0 : i32
    return %c0_i32, %c0_i32_0 : i32, i32
  }
  func.func @transform_18(%arg0: i32) -> (i32, i32) {
    %c0_i32 = arith.constant 0 : i32
    %c0_i32_0 = arith.constant 0 : i32
    %c0_i32_1 = arith.constant 0 : i32
    return %c0_i32, %c0_i32_0 : i32, i32
  }
  func.func @transform_19(%arg0: i32) -> (i32, i32) {
    %c0_i32 = arith.constant 0 : i32
    %c0_i32_0 = arith.constant 0 : i32
    %c0_i32_1 = arith.constant 0 : i32
    return %c0_i32, %c0_i32_0 : i32, i32
  }
  func.func @transform_20(%arg0: i32) -> (i32, i32) {
    %c0_i32 = arith.constant 0 : i32
    %c0_i32_0 = arith.constant 0 : i32
    %c0_i32_1 = arith.constant 0 : i32
    return %c0_i32, %c0_i32_0 : i32, i32
  }
}

</mosaic_0001>

<llo_original>
// kernel: tpu_custom_call.1
$region0: #{tpu_custom_call.1}
  #allocation0 [shape = 'u32[]', space=smem, size = 0x4, offset = 0x4, fixed_abs, tag = 'smem constant byte address 0x4 - core index']
  #allocation1 [shape = 'u32[144,128]{1,0:T(1,128)}', space=vmem, size = 0x12000, scoped, tag = 'internal scratch']
  #allocation2 [shape = 'f32[24,32]{1,0:T(8,128)}', space=vmem, size = 0x3000, scoped, tag = 'scratch operand']
  #allocation3 [shape = 'f32[1,1]{1,0:T(1,128)S(1)}', space=vmem, size = 0x200, scoped, tag = 'scoped memory for tpu_custom_call.1']
  %s0 = inlined_call_operand.vmem [shape: f32[24,6], index: 0, kind: input, shape index: {}]
  %s1 = inlined_call_operand.vmem [shape: f32[24,32], index: 1, kind: input, shape index: {}]
  %s2 = inlined_call_operand.vmem [shape: f32[24,24], index: 2, kind: input, shape index: {}]
  %s3 = inlined_call_operand.vmem [shape: f32[6,32], index: 3, kind: input, shape index: {}]
  %s4 = inlined_call_operand.vmem [shape: f32[2,32,96], index: 4, kind: input, shape index: {}]
  %s5 = inlined_call_operand.vmem [shape: f32[2,1,96], index: 5, kind: input, shape index: {}]
  %s6 = inlined_call_operand.vmem [shape: f32[2,32,32], index: 6, kind: input, shape index: {}]
  %s7 = inlined_call_operand.vmem [shape: f32[2,1,32], index: 7, kind: input, shape index: {}]
  %s8 = inlined_call_operand.vmem [shape: f32[2,1,32], index: 8, kind: input, shape index: {}]
  %s9 = inlined_call_operand.vmem [shape: f32[2,1,32], index: 9, kind: input, shape index: {}]
  %s10 = inlined_call_operand.vmem [shape: f32[2,32,128], index: 10, kind: input, shape index: {}]
  %s11 = inlined_call_operand.vmem [shape: f32[2,1,128], index: 11, kind: input, shape index: {}]
  %s12 = inlined_call_operand.vmem [shape: f32[2,128,32], index: 12, kind: input, shape index: {}]
  %s13 = inlined_call_operand.vmem [shape: f32[2,1,32], index: 13, kind: input, shape index: {}]
  %s14 = inlined_call_operand.vmem [shape: f32[2,1,32], index: 14, kind: input, shape index: {}]
  %s15 = inlined_call_operand.vmem [shape: f32[2,1,32], index: 15, kind: input, shape index: {}]
  %s16 = inlined_call_operand.vmem [shape: f32[1,32], index: 16, kind: input, shape index: {}]
  %s17 = inlined_call_operand.vmem [shape: f32[1,32], index: 17, kind: input, shape index: {}]
  %s18 = inlined_call_operand.vmem [shape: f32[1,32], index: 18, kind: input, shape index: {}]
  %s19 = inlined_call_operand.<no memory space> [shape: f32[1,1], index: 19, kind: input, shape index: {}]
  %s20 = inlined_call_operand.vmem [shape: f32[24,1], index: 20, kind: output, shape index: {}]
  %s21 = sld [smem:[#allocation0]]
  $region121: #{tpu_custom_call.1} parent=0
    _
  %s23 = ssub.s32 1, %s21
  %s24 = scalar_select 0, %s23, %s21
  %v25 = vstv %s19
  %26 = vst [vmem:[#allocation3] sm:$0x1] %v25
  loop: start=0, step=1, limit=4
  $region2: #{tpu_custom_call.1} parent=0 // loop_pre_header
    _
  $region3: #{tpu_custom_call.1} parent=0 // loop_header
    %s28 = sphi 0, %s32
    %p29 = scmp.ge.s32.totalorder %s28, 4
    %s36 = sphi 0, %s36
    %s38 = sphi 0, %s36
    %s39 = sphi 0, %s38
    %s53 = sphi 0, %s39
    %s57 = sphi 0, %s57
    %s59 = sphi 0, %s57
    %s60 = sphi 0, %s59
    %s74 = sphi 0, %s60
    %s78 = sphi 0, %s78
    %s80 = sphi 0, %s78
    %s81 = sphi 0, %s80
    %s95 = sphi 0, %s81
    %s99 = sphi 0, %s99
    %s101 = sphi 0, %s99
    %s102 = sphi 0, %s101
    %s116 = sphi 0, %s102
    %s122 = sphi 0, %s124
    %s125 = sphi 0, %s122
    %s126 = sphi 0, %s125
    %s142 = sphi 0, %s126
    %s148 = sphi 0, %s150
    %s151 = sphi 0, %s148
    %s152 = sphi 0, %s151
    %s168 = sphi 0, %s152
    %s174 = sphi 0, %s176
    %s177 = sphi 0, %s174
    %s178 = sphi 0, %s177
    %s194 = sphi 0, %s178
    %s200 = sphi 0, %s202
    %s203 = sphi 0, %s200
    %s204 = sphi 0, %s203
    %s220 = sphi 0, %s204
    %s226 = sphi 0, %s228
    %s229 = sphi 0, %s226
    %s230 = sphi 0, %s229
    %s246 = sphi 0, %s230
    %s252 = sphi 0, %s254
    %s255 = sphi 0, %s252
    %s256 = sphi 0, %s255
    %s272 = sphi 0, %s256
    %s278 = sphi 0, %s280
    %s281 = sphi 0, %s278
    %s282 = sphi 0, %s281
    %s298 = sphi 0, %s282
    %s304 = sphi 0, %s306
    %s307 = sphi 0, %s304
    %s308 = sphi 0, %s307
    %s324 = sphi 0, %s308
    %s330 = sphi 0, %s332
    %s333 = sphi 0, %s330
    %s334 = sphi 0, %s333
    %s350 = sphi 0, %s334
    %s356 = sphi 0, %s358
    %s359 = sphi 0, %s356
    %s360 = sphi 0, %s359
    %s376 = sphi 0, %s360
    %s382 = sphi 0, %s384
    %s385 = sphi 0, %s382
    %s386 = sphi 0, %s385
    %s402 = sphi 0, %s386
    %s408 = sphi 0, %s410
    %s411 = sphi 0, %s408
    %s412 = sphi 0, %s411
    %s428 = sphi 0, %s412
    %s432 = sphi 0, %s432
    %s434 = sphi 0, %s432
    %s435 = sphi 0, %s434
    %s449 = sphi 0, %s435
    %s453 = sphi 0, %s453
    %s455 = sphi 0, %s453
    %s456 = sphi 0, %s455
    %s470 = sphi 0, %s456
    %s474 = sphi 0, %s474
    %s476 = sphi 0, %s474
    %s477 = sphi 0, %s476
    %s491 = sphi 0, %s477
    %s495 = sphi 0, %s495
    %s497 = sphi 0, %s495
    %s498 = sphi 0, %s497
    %s512 = sphi 0, %s498
    %s516 = sphi 0, %s516
    %s518 = sphi 0, %s516
    %s519 = sphi 0, %s518
    %s533 = sphi 0, %s519
  $region4: #{tpu_custom_call.1} parent=0 // loop_header_branch
    %31 = sbr.rel (%p29) target = $region8
  $region5: #{tpu_custom_call.1} parent=0 // loop_body
    %s33 = ssub.s32 %s28, 1
    %s34 = ssub.s32 %s28, 2
    %s35 = sadd.s32 %s28, 1
    %s37 = sadd.s32 %s36, 1
    %p40 = scmp.eq.s32.totalorder %s28, 1
    %p41 = scmp.ne.s32.totalorder %s36, %s38
    %p42 = scmp.eq.s32.totalorder %s28, 0
    %p43 = por %p41, %p42
    %p44 = scmp.ne.s32.totalorder %s36, %s38
    %p45 = scmp.eq.s32.totalorder %s33, 1
    %p46 = por %p44, %p45
    %p47 = scmp.ne.s32.totalorder %s38, %s39
    %p48 = scmp.eq.s32.totalorder %s33, 0
    %p49 = por %p47, %p48
    %p50 = scmp.ne.s32.totalorder %s38, %s39
    %p51 = scmp.eq.s32.totalorder %s34, 1
    %p52 = por %p50, %p51
    %p54 = scmp.ne.s32.totalorder %s39, %s53
    %p55 = scmp.eq.s32.totalorder %s34, 0
    %p56 = por %p54, %p55
    %s58 = sadd.s32 %s57, 1
    %p61 = scmp.eq.s32.totalorder %s28, 1
    %p62 = scmp.ne.s32.totalorder %s57, %s59
    %p63 = scmp.eq.s32.totalorder %s28, 0
    %p64 = por %p62, %p63
    %p65 = scmp.ne.s32.totalorder %s57, %s59
    %p66 = scmp.eq.s32.totalorder %s33, 1
    %p67 = por %p65, %p66
    %p68 = scmp.ne.s32.totalorder %s59, %s60
    %p69 = scmp.eq.s32.totalorder %s33, 0
    %p70 = por %p68, %p69
    %p71 = scmp.ne.s32.totalorder %s59, %s60
    %p72 = scmp.eq.s32.totalorder %s34, 1
    %p73 = por %p71, %p72
    %p75 = scmp.ne.s32.totalorder %s60, %s74
    %p76 = scmp.eq.s32.totalorder %s34, 0
    %p77 = por %p75, %p76
    %s79 = sadd.s32 %s78, 1
    %p82 = scmp.eq.s32.totalorder %s28, 1
    %p83 = scmp.ne.s32.totalorder %s78, %s80
    %p84 = scmp.eq.s32.totalorder %s28, 0
    %p85 = por %p83, %p84
    %p86 = scmp.ne.s32.totalorder %s78, %s80
    %p87 = scmp.eq.s32.totalorder %s33, 1
    %p88 = por %p86, %p87
    %p89 = scmp.ne.s32.totalorder %s80, %s81
    %p90 = scmp.eq.s32.totalorder %s33, 0
    %p91 = por %p89, %p90
    %p92 = scmp.ne.s32.totalorder %s80, %s81
    %p93 = scmp.eq.s32.totalorder %s34, 1
    %p94 = por %p92, %p93
    %p96 = scmp.ne.s32.totalorder %s81, %s95
    %p97 = scmp.eq.s32.totalorder %s34, 0
    %p98 = por %p96, %p97
    %s100 = sadd.s32 %s99, 1
    %p103 = scmp.eq.s32.totalorder %s28, 1
    %p104 = scmp.ne.s32.totalorder %s99, %s101
    %p105 = scmp.eq.s32.totalorder %s28, 0
    %p106 = por %p104, %p105
    %p107 = scmp.ne.s32.totalorder %s99, %s101
    %p108 = scmp.eq.s32.totalorder %s33, 1
    %p109 = por %p107, %p108
    %p110 = scmp.ne.s32.totalorder %s101, %s102
    %p111 = scmp.eq.s32.totalorder %s33, 0
    %p112 = por %p110, %p111
    %p113 = scmp.ne.s32.totalorder %s101, %s102
    %p114 = scmp.eq.s32.totalorder %s34, 1
    %p115 = por %p113, %p114
    %p117 = scmp.ne.s32.totalorder %s102, %s116
    %p118 = scmp.eq.s32.totalorder %s34, 0
    %p119 = por %p117, %p118
    %s120 = ssub.s32 %s28, %s35
    %p121 = scmp.eq.s32.totalorder %s120, 0
    %s123 = sadd.s32 %s122, 1
    %s124 = scalar_select %p121, %s122, %s123
    %p127 = pneg %p121
    %p128 = scmp.eq.s32.totalorder %s28, 1
    %p129 = por %p127, %p128
    %p130 = scmp.ne.s32.totalorder %s122, %s125
    %p131 = scmp.eq.s32.totalorder %s28, 0
    %p132 = por %p130, %p131
    %p133 = scmp.ne.s32.totalorder %s122, %s125
    %p134 = scmp.eq.s32.totalorder %s33, 1
    %p135 = por %p133, %p134
    %p136 = scmp.ne.s32.totalorder %s125, %s126
    %p137 = scmp.eq.s32.totalorder %s33, 0
    %p138 = por %p136, %p137
    %p139 = scmp.ne.s32.totalorder %s125, %s126
    %p140 = scmp.eq.s32.totalorder %s34, 1
    %p141 = por %p139, %p140
    %p143 = scmp.ne.s32.totalorder %s126, %s142
    %p144 = scmp.eq.s32.totalorder %s34, 0
    %p145 = por %p143, %p144
    %s146 = ssub.s32 %s28, %s35
    %p147 = scmp.eq.s32.totalorder %s146, 0
    %s149 = sadd.s32 %s148, 1
    %s150 = scalar_select %p147, %s148, %s149
    %p153 = pneg %p147
    %p154 = scmp.eq.s32.totalorder %s28, 1
    %p155 = por %p153, %p154
    %p156 = scmp.ne.s32.totalorder %s148, %s151
    %p157 = scmp.eq.s32.totalorder %s28, 0
    %p158 = por %p156, %p157
    %p159 = scmp.ne.s32.totalorder %s148, %s151
    %p160 = scmp.eq.s32.totalorder %s33, 1
    %p161 = por %p159, %p160
    %p162 = scmp.ne.s32.totalorder %s151, %s152
    %p163 = scmp.eq.s32.totalorder %s33, 0
    %p164 = por %p162, %p163
    %p165 = scmp.ne.s32.totalorder %s151, %s152
    %p166 = scmp.eq.s32.totalorder %s34, 1
    %p167 = por %p165, %p166
    %p169 = scmp.ne.s32.totalorder %s152, %s168
    %p170 = scmp.eq.s32.totalorder %s34, 0
    %p171 = por %p169, %p170
    %s172 = ssub.s32 %s28, %s35
    %p173 = scmp.eq.s32.totalorder %s172, 0
    %s175 = sadd.s32 %s174, 1
    %s176 = scalar_select %p173, %s174, %s175
    %p179 = pneg %p173
    %p180 = scmp.eq.s32.totalorder %s28, 1
    %p181 = por %p179, %p180
    %p182 = scmp.ne.s32.totalorder %s174, %s177
    %p183 = scmp.eq.s32.totalorder %s28, 0
    %p184 = por %p182, %p183
    %p185 = scmp.ne.s32.totalorder %s174, %s177
    %p186 = scmp.eq.s32.totalorder %s33, 1
    %p187 = por %p185, %p186
    %p188 = scmp.ne.s32.totalorder %s177, %s178
    %p189 = scmp.eq.s32.totalorder %s33, 0
    %p190 = por %p188, %p189
    %p191 = scmp.ne.s32.totalorder %s177, %s178
    %p192 = scmp.eq.s32.totalorder %s34, 1
    %p193 = por %p191, %p192
    %p195 = scmp.ne.s32.totalorder %s178, %s194
    %p196 = scmp.eq.s32.totalorder %s34, 0
    %p197 = por %p195, %p196
    %s198 = ssub.s32 %s28, %s35
    %p199 = scmp.eq.s32.totalorder %s198, 0
    %s201 = sadd.s32 %s200, 1
    %s202 = scalar_select %p199, %s200, %s201
    %p205 = pneg %p199
    %p206 = scmp.eq.s32.totalorder %s28, 1
    %p207 = por %p205, %p206
    %p208 = scmp.ne.s32.totalorder %s200, %s203
    %p209 = scmp.eq.s32.totalorder %s28, 0
    %p210 = por %p208, %p209
    %p211 = scmp.ne.s32.totalorder %s200, %s203
    %p212 = scmp.eq.s32.totalorder %s33, 1
    %p213 = por %p211, %p212
    %p214 = scmp.ne.s32.totalorder %s203, %s204
    %p215 = scmp.eq.s32.totalorder %s33, 0
    %p216 = por %p214, %p215
    %p217 = scmp.ne.s32.totalorder %s203, %s204
    %p218 = scmp.eq.s32.totalorder %s34, 1
    %p219 = por %p217, %p218
    %p221 = scmp.ne.s32.totalorder %s204, %s220
    %p222 = scmp.eq.s32.totalorder %s34, 0
    %p223 = por %p221, %p222
    %s224 = ssub.s32 %s28, %s35
    %p225 = scmp.eq.s32.totalorder %s224, 0
    %s227 = sadd.s32 %s226, 1
    %s228 = scalar_select %p225, %s226, %s227
    %p231 = pneg %p225
    %p232 = scmp.eq.s32.totalorder %s28, 1
    %p233 = por %p231, %p232
    %p234 = scmp.ne.s32.totalorder %s226, %s229
    %p235 = scmp.eq.s32.totalorder %s28, 0
    %p236 = por %p234, %p235
    %p237 = scmp.ne.s32.totalorder %s226, %s229
    %p238 = scmp.eq.s32.totalorder %s33, 1
    %p239 = por %p237, %p238
    %p240 = scmp.ne.s32.totalorder %s229, %s230
    %p241 = scmp.eq.s32.totalorder %s33, 0
    %p242 = por %p240, %p241
    %p243 = scmp.ne.s32.totalorder %s229, %s230
    %p244 = scmp.eq.s32.totalorder %s34, 1
    %p245 = por %p243, %p244
    %p247 = scmp.ne.s32.totalorder %s230, %s246
    %p248 = scmp.eq.s32.totalorder %s34, 0
    %p249 = por %p247, %p248
    %s250 = ssub.s32 %s28, %s35
    %p251 = scmp.eq.s32.totalorder %s250, 0
    %s253 = sadd.s32 %s252, 1
    %s254 = scalar_select %p251, %s252, %s253
    %p257 = pneg %p251
    %p258 = scmp.eq.s32.totalorder %s28, 1
    %p259 = por %p257, %p258
    %p260 = scmp.ne.s32.totalorder %s252, %s255
    %p261 = scmp.eq.s32.totalorder %s28, 0
    %p262 = por %p260, %p261
    %p263 = scmp.ne.s32.totalorder %s252, %s255
    %p264 = scmp.eq.s32.totalorder %s33, 1
    %p265 = por %p263, %p264
    %p266 = scmp.ne.s32.totalorder %s255, %s256
    %p267 = scmp.eq.s32.totalorder %s33, 0
    %p268 = por %p266, %p267
    %p269 = scmp.ne.s32.totalorder %s255, %s256
    %p270 = scmp.eq.s32.totalorder %s34, 1
    %p271 = por %p269, %p270
    %p273 = scmp.ne.s32.totalorder %s256, %s272
    %p274 = scmp.eq.s32.totalorder %s34, 0
    %p275 = por %p273, %p274
    %s276 = ssub.s32 %s28, %s35
    %p277 = scmp.eq.s32.totalorder %s276, 0
    %s279 = sadd.s32 %s278, 1
    %s280 = scalar_select %p277, %s278, %s279
    %p283 = pneg %p277
    %p284 = scmp.eq.s32.totalorder %s28, 1
    %p285 = por %p283, %p284
    %p286 = scmp.ne.s32.totalorder %s278, %s281
    %p287 = scmp.eq.s32.totalorder %s28, 0
    %p288 = por %p286, %p287
    %p289 = scmp.ne.s32.totalorder %s278, %s281
    %p290 = scmp.eq.s32.totalorder %s33, 1
    %p291 = por %p289, %p290
    %p292 = scmp.ne.s32.totalorder %s281, %s282
    %p293 = scmp.eq.s32.totalorder %s33, 0
    %p294 = por %p292, %p293
    %p295 = scmp.ne.s32.totalorder %s281, %s282
    %p296 = scmp.eq.s32.totalorder %s34, 1
    %p297 = por %p295, %p296
    %p299 = scmp.ne.s32.totalorder %s282, %s298
    %p300 = scmp.eq.s32.totalorder %s34, 0
    %p301 = por %p299, %p300
    %s302 = ssub.s32 %s28, %s35
    %p303 = scmp.eq.s32.totalorder %s302, 0
    %s305 = sadd.s32 %s304, 1
    %s306 = scalar_select %p303, %s304, %s305
    %p309 = pneg %p303
    %p310 = scmp.eq.s32.totalorder %s28, 1
    %p311 = por %p309, %p310
    %p312 = scmp.ne.s32.totalorder %s304, %s307
    %p313 = scmp.eq.s32.totalorder %s28, 0
    %p314 = por %p312, %p313
    %p315 = scmp.ne.s32.totalorder %s304, %s307
    %p316 = scmp.eq.s32.totalorder %s33, 1
    %p317 = por %p315, %p316
    %p318 = scmp.ne.s32.totalorder %s307, %s308
    %p319 = scmp.eq.s32.totalorder %s33, 0
    %p320 = por %p318, %p319
    %p321 = scmp.ne.s32.totalorder %s307, %s308
    %p322 = scmp.eq.s32.totalorder %s34, 1
    %p323 = por %p321, %p322
    %p325 = scmp.ne.s32.totalorder %s308, %s324
    %p326 = scmp.eq.s32.totalorder %s34, 0
    %p327 = por %p325, %p326
    %s328 = ssub.s32 %s28, %s35
    %p329 = scmp.eq.s32.totalorder %s328, 0
    %s331 = sadd.s32 %s330, 1
    %s332 = scalar_select %p329, %s330, %s331
    %p335 = pneg %p329
    %p336 = scmp.eq.s32.totalorder %s28, 1
    %p337 = por %p335, %p336
    %p338 = scmp.ne.s32.totalorder %s330, %s333
    %p339 = scmp.eq.s32.totalorder %s28, 0
    %p340 = por %p338, %p339
    %p341 = scmp.ne.s32.totalorder %s330, %s333
    %p342 = scmp.eq.s32.totalorder %s33, 1
    %p343 = por %p341, %p342
    %p344 = scmp.ne.s32.totalorder %s333, %s334
    %p345 = scmp.eq.s32.totalorder %s33, 0
    %p346 = por %p344, %p345
    %p347 = scmp.ne.s32.totalorder %s333, %s334
    %p348 = scmp.eq.s32.totalorder %s34, 1
    %p349 = por %p347, %p348
    %p351 = scmp.ne.s32.totalorder %s334, %s350
    %p352 = scmp.eq.s32.totalorder %s34, 0
    %p353 = por %p351, %p352
    %s354 = ssub.s32 %s28, %s35
    %p355 = scmp.eq.s32.totalorder %s354, 0
    %s357 = sadd.s32 %s356, 1
    %s358 = scalar_select %p355, %s356, %s357
    %p361 = pneg %p355
    %p362 = scmp.eq.s32.totalorder %s28, 1
    %p363 = por %p361, %p362
    %p364 = scmp.ne.s32.totalorder %s356, %s359
    %p365 = scmp.eq.s32.totalorder %s28, 0
    %p366 = por %p364, %p365
    %p367 = scmp.ne.s32.totalorder %s356, %s359
    %p368 = scmp.eq.s32.totalorder %s33, 1
    %p369 = por %p367, %p368
    %p370 = scmp.ne.s32.totalorder %s359, %s360
    %p371 = scmp.eq.s32.totalorder %s33, 0
    %p372 = por %p370, %p371
    %p373 = scmp.ne.s32.totalorder %s359, %s360
    %p374 = scmp.eq.s32.totalorder %s34, 1
    %p375 = por %p373, %p374
    %p377 = scmp.ne.s32.totalorder %s360, %s376
    %p378 = scmp.eq.s32.totalorder %s34, 0
    %p379 = por %p377, %p378
    %s380 = ssub.s32 %s28, %s35
    %p381 = scmp.eq.s32.totalorder %s380, 0
    %s383 = sadd.s32 %s382, 1
    %s384 = scalar_select %p381, %s382, %s383
    %p387 = pneg %p381
    %p388 = scmp.eq.s32.totalorder %s28, 1
    %p389 = por %p387, %p388
    %p390 = scmp.ne.s32.totalorder %s382, %s385
    %p391 = scmp.eq.s32.totalorder %s28, 0
    %p392 = por %p390, %p391
    %p393 = scmp.ne.s32.totalorder %s382, %s385
    %p394 = scmp.eq.s32.totalorder %s33, 1
    %p395 = por %p393, %p394
    %p396 = scmp.ne.s32.totalorder %s385, %s386
    %p397 = scmp.eq.s32.totalorder %s33, 0
    %p398 = por %p396, %p397
    %p399 = scmp.ne.s32.totalorder %s385, %s386
    %p400 = scmp.eq.s32.totalorder %s34, 1
    %p401 = por %p399, %p400
    %p403 = scmp.ne.s32.totalorder %s386, %s402
    %p404 = scmp.eq.s32.totalorder %s34, 0
    %p405 = por %p403, %p404
    %s406 = ssub.s32 %s28, %s35
    %p407 = scmp.eq.s32.totalorder %s406, 0
    %s409 = sadd.s32 %s408, 1
    %s410 = scalar_select %p407, %s408, %s409
    %p413 = pneg %p407
    %p414 = scmp.eq.s32.totalorder %s28, 1
    %p415 = por %p413, %p414
    %p416 = scmp.ne.s32.totalorder %s408, %s411
    %p417 = scmp.eq.s32.totalorder %s28, 0
    %p418 = por %p416, %p417
    %p419 = scmp.ne.s32.totalorder %s408, %s411
    %p420 = scmp.eq.s32.totalorder %s33, 1
    %p421 = por %p419, %p420
    %p422 = scmp.ne.s32.totalorder %s411, %s412
    %p423 = scmp.eq.s32.totalorder %s33, 0
    %p424 = por %p422, %p423
    %p425 = scmp.ne.s32.totalorder %s411, %s412
    %p426 = scmp.eq.s32.totalorder %s34, 1
    %p427 = por %p425, %p426
    %p429 = scmp.ne.s32.totalorder %s412, %s428
    %p430 = scmp.eq.s32.totalorder %s34, 0
    %p431 = por %p429, %p430
    %s433 = sadd.s32 %s432, 1
    %p436 = scmp.eq.s32.totalorder %s28, 1
    %p437 = scmp.ne.s32.totalorder %s432, %s434
    %p438 = scmp.eq.s32.totalorder %s28, 0
    %p439 = por %p437, %p438
    %p440 = scmp.ne.s32.totalorder %s432, %s434
    %p441 = scmp.eq.s32.totalorder %s33, 1
    %p442 = por %p440, %p441
    %p443 = scmp.ne.s32.totalorder %s434, %s435
    %p444 = scmp.eq.s32.totalorder %s33, 0
    %p445 = por %p443, %p444
    %p446 = scmp.ne.s32.totalorder %s434, %s435
    %p447 = scmp.eq.s32.totalorder %s34, 1
    %p448 = por %p446, %p447
    %p450 = scmp.ne.s32.totalorder %s435, %s449
    %p451 = scmp.eq.s32.totalorder %s34, 0
    %p452 = por %p450, %p451
    %s454 = sadd.s32 %s453, 1
    %p457 = scmp.eq.s32.totalorder %s28, 1
    %p458 = scmp.ne.s32.totalorder %s453, %s455
    %p459 = scmp.eq.s32.totalorder %s28, 0
    %p460 = por %p458, %p459
    %p461 = scmp.ne.s32.totalorder %s453, %s455
    %p462 = scmp.eq.s32.totalorder %s33, 1
    %p463 = por %p461, %p462
    %p464 = scmp.ne.s32.totalorder %s455, %s456
    %p465 = scmp.eq.s32.totalorder %s33, 0
    %p466 = por %p464, %p465
    %p467 = scmp.ne.s32.totalorder %s455, %s456
    %p468 = scmp.eq.s32.totalorder %s34, 1
    %p469 = por %p467, %p468
    %p471 = scmp.ne.s32.totalorder %s456, %s470
    %p472 = scmp.eq.s32.totalorder %s34, 0
    %p473 = por %p471, %p472
    %s475 = sadd.s32 %s474, 1
    %p478 = scmp.eq.s32.totalorder %s28, 1
    %p479 = scmp.ne.s32.totalorder %s474, %s476
    %p480 = scmp.eq.s32.totalorder %s28, 0
    %p481 = por %p479, %p480
    %p482 = scmp.ne.s32.totalorder %s474, %s476
    %p483 = scmp.eq.s32.totalorder %s33, 1
    %p484 = por %p482, %p483
    %p485 = scmp.ne.s32.totalorder %s476, %s477
    %p486 = scmp.eq.s32.totalorder %s33, 0
    %p487 = por %p485, %p486
    %p488 = scmp.ne.s32.totalorder %s476, %s477
    %p489 = scmp.eq.s32.totalorder %s34, 1
    %p490 = por %p488, %p489
    %p492 = scmp.ne.s32.totalorder %s477, %s491
    %p493 = scmp.eq.s32.totalorder %s34, 0
    %p494 = por %p492, %p493
    %s496 = sadd.s32 %s495, 1
    %p499 = scmp.eq.s32.totalorder %s28, 1
    %p500 = scmp.ne.s32.totalorder %s495, %s497
    %p501 = scmp.eq.s32.totalorder %s28, 0
    %p502 = por %p500, %p501
    %p503 = scmp.ne.s32.totalorder %s495, %s497
    %p504 = scmp.eq.s32.totalorder %s33, 1
    %p505 = por %p503, %p504
    %p506 = scmp.ne.s32.totalorder %s497, %s498
    %p507 = scmp.eq.s32.totalorder %s33, 0
    %p508 = por %p506, %p507
    %p509 = scmp.ne.s32.totalorder %s497, %s498
    %p510 = scmp.eq.s32.totalorder %s34, 1
    %p511 = por %p509, %p510
    %p513 = scmp.ne.s32.totalorder %s498, %s512
    %p514 = scmp.eq.s32.totalorder %s34, 0
    %p515 = por %p513, %p514
    %s517 = sadd.s32 %s516, 1
    %p520 = scmp.eq.s32.totalorder %s28, 1
    %p521 = scmp.ne.s32.totalorder %s516, %s518
    %p522 = scmp.eq.s32.totalorder %s28, 0
    %p523 = por %p521, %p522
    %p524 = scmp.ne.s32.totalorder %s516, %s518
    %p525 = scmp.eq.s32.totalorder %s33, 1
    %p526 = por %p524, %p525
    %p527 = scmp.ne.s32.totalorder %s518, %s519
    %p528 = scmp.eq.s32.totalorder %s33, 0
    %p529 = por %p527, %p528
    %p530 = scmp.ne.s32.totalorder %s518, %s519
    %p531 = scmp.eq.s32.totalorder %s34, 1
    %p532 = por %p530, %p531
    %p534 = scmp.ne.s32.totalorder %s519, %s533
    %p535 = scmp.eq.s32.totalorder %s34, 0
    %p536 = por %p534, %p535
    %p537 = scmp.le.s32.totalorder 1, %s28
    %p538 = scmp.lt.s32.totalorder %s28, 3
    %p539 = pnand %p537, %p538
    %p540 = pneg %p539
    // Predicated region
    $region9: #{tpu_custom_call.1} parent=5 // pred_check
      _
    $region10: #{tpu_custom_call.1} parent=5 // pred_check_branch
      %542 = sbr.rel (%p539) target = $region12
    $region11: #{tpu_custom_call.1} parent=5 // pred_region
      %s543 = ssub.s32 %s28, 1
      // Predicated region
      $region13: #{tpu_custom_call.1} parent=11 // pred_check
        %p544 = pneg %p49
      $region14: #{tpu_custom_call.1} parent=11 // pred_check_branch
        %546 = sbr.rel (%p544) target = $region16
      $region15: #{tpu_custom_call.1} parent=11 // pred_region
        _
      $region16: #{tpu_custom_call.1} parent=11 // pred_fallthru
        _
      // Predicated region
      $region17: #{tpu_custom_call.1} parent=11 // pred_check
        %p547 = pneg %p70
      $region18: #{tpu_custom_call.1} parent=11 // pred_check_branch
        %549 = sbr.rel (%p547) target = $region20
      $region19: #{tpu_custom_call.1} parent=11 // pred_region
        _
      $region20: #{tpu_custom_call.1} parent=11 // pred_fallthru
        _
      // Predicated region
      $region21: #{tpu_custom_call.1} parent=11 // pred_check
        %p550 = pneg %p91
      $region22: #{tpu_custom_call.1} parent=11 // pred_check_branch
        %552 = sbr.rel (%p550) target = $region24
      $region23: #{tpu_custom_call.1} parent=11 // pred_region
        _
      $region24: #{tpu_custom_call.1} parent=11 // pred_fallthru
        _
      // Predicated region
      $region25: #{tpu_custom_call.1} parent=11 // pred_check
        %p553 = pneg %p112
      $region26: #{tpu_custom_call.1} parent=11 // pred_check_branch
        %555 = sbr.rel (%p553) target = $region28
      $region27: #{tpu_custom_call.1} parent=11 // pred_region
        _
      $region28: #{tpu_custom_call.1} parent=11 // pred_fallthru
        _
      // Predicated region
      $region29: #{tpu_custom_call.1} parent=11 // pred_check
        %p556 = pneg %p445
      $region30: #{tpu_custom_call.1} parent=11 // pred_check_branch
        %558 = sbr.rel (%p556) target = $region32
      $region31: #{tpu_custom_call.1} parent=11 // pred_region
        _
      $region32: #{tpu_custom_call.1} parent=11 // pred_fallthru
        _
      // Predicated region
      $region33: #{tpu_custom_call.1} parent=11 // pred_check
        %p559 = pneg %p466
      $region34: #{tpu_custom_call.1} parent=11 // pred_check_branch
        %561 = sbr.rel (%p559) target = $region36
      $region35: #{tpu_custom_call.1} parent=11 // pred_region
        _
      $region36: #{tpu_custom_call.1} parent=11 // pred_fallthru
        _
      // Predicated region
      $region37: #{tpu_custom_call.1} parent=11 // pred_check
        %p562 = pneg %p487
      $region38: #{tpu_custom_call.1} parent=11 // pred_check_branch
        %564 = sbr.rel (%p562) target = $region40
      $region39: #{tpu_custom_call.1} parent=11 // pred_region
        _
      $region40: #{tpu_custom_call.1} parent=11 // pred_fallthru
        _
      // Predicated region
      $region41: #{tpu_custom_call.1} parent=11 // pred_check
        %p565 = pneg %p508
      $region42: #{tpu_custom_call.1} parent=11 // pred_check_branch
        %567 = sbr.rel (%p565) target = $region44
      $region43: #{tpu_custom_call.1} parent=11 // pred_region
        _
      $region44: #{tpu_custom_call.1} parent=11 // pred_fallthru
        _
    $region12: #{tpu_custom_call.1} parent=5 // pred_fallthru
      _
    %p568 = scmp.lt.s32.totalorder %s28, 2
    // Predicated region
    $region45: #{tpu_custom_call.1} parent=5 // pred_check
      %p569 = pneg %p568
    $region46: #{tpu_custom_call.1} parent=5 // pred_check_branch
      %571 = sbr.rel (%p569) target = $region48
    $region47: #{tpu_custom_call.1} parent=5 // pred_region
      // Predicated region
      $region49: #{tpu_custom_call.1} parent=47 // pred_check
        %p572 = pneg %p132
      $region50: #{tpu_custom_call.1} parent=47 // pred_check_branch
        %574 = sbr.rel (%p572) target = $region52
      $region51: #{tpu_custom_call.1} parent=47 // pred_region
        %p575 = scmp.lt.s32.totalorder %s28, 1
        %s576 = scalar_select %p575, %s28, 1
        %s577 = smul.addr %s576, 4
        %s578 = smul.addr %s577, 8
        %s579 = scalar_lea.vmem %s4, %s578
      $region52: #{tpu_custom_call.1} parent=47 // pred_fallthru
        _
      // Predicated region
      $region53: #{tpu_custom_call.1} parent=47 // pred_check
        %p580 = pneg %p158
      $region54: #{tpu_custom_call.1} parent=47 // pred_check_branch
        %582 = sbr.rel (%p580) target = $region56
      $region55: #{tpu_custom_call.1} parent=47 // pred_region
        %p583 = scmp.lt.s32.totalorder %s28, 1
        %s584 = scalar_select %p583, %s28, 1
        %s585 = scalar_lea.vmem %s5, %s584
      $region56: #{tpu_custom_call.1} parent=47 // pred_fallthru
        _
      // Predicated region
      $region57: #{tpu_custom_call.1} parent=47 // pred_check
        %p586 = pneg %p184
      $region58: #{tpu_custom_call.1} parent=47 // pred_check_branch
        %588 = sbr.rel (%p586) target = $region60
      $region59: #{tpu_custom_call.1} parent=47 // pred_region
        %p589 = scmp.lt.s32.totalorder %s28, 1
        %s590 = scalar_select %p589, %s28, 1
        %s591 = smul.addr %s590, 4
        %s592 = smul.addr %s591, 8
        %s593 = scalar_lea.vmem %s6, %s592
      $region60: #{tpu_custom_call.1} parent=47 // pred_fallthru
        _
      // Predicated region
      $region61: #{tpu_custom_call.1} parent=47 // pred_check
        %p594 = pneg %p210
      $region62: #{tpu_custom_call.1} parent=47 // pred_check_branch
        %596 = sbr.rel (%p594) target = $region64
      $region63: #{tpu_custom_call.1} parent=47 // pred_region
        %p597 = scmp.lt.s32.totalorder %s28, 1
        %s598 = scalar_select %p597, %s28, 1
        %s599 = scalar_lea.vmem %s7, %s598
      $region64: #{tpu_custom_call.1} parent=47 // pred_fallthru
        _
      // Predicated region
      $region65: #{tpu_custom_call.1} parent=47 // pred_check
        %p600 = pneg %p236
      $region66: #{tpu_custom_call.1} parent=47 // pred_check_branch
        %602 = sbr.rel (%p600) target = $region68
      $region67: #{tpu_custom_call.1} parent=47 // pred_region
        %p603 = scmp.lt.s32.totalorder %s28, 1
        %s604 = scalar_select %p603, %s28, 1
        %s605 = scalar_lea.vmem %s8, %s604
      $region68: #{tpu_custom_call.1} parent=47 // pred_fallthru
        _
      // Predicated region
      $region69: #{tpu_custom_call.1} parent=47 // pred_check
        %p606 = pneg %p262
      $region70: #{tpu_custom_call.1} parent=47 // pred_check_branch
        %608 = sbr.rel (%p606) target = $region72
      $region71: #{tpu_custom_call.1} parent=47 // pred_region
        %p609 = scmp.lt.s32.totalorder %s28, 1
        %s610 = scalar_select %p609, %s28, 1
        %s611 = scalar_lea.vmem %s9, %s610
      $region72: #{tpu_custom_call.1} parent=47 // pred_fallthru
        _
      // Predicated region
      $region73: #{tpu_custom_call.1} parent=47 // pred_check
        %p612 = pneg %p288
      $region74: #{tpu_custom_call.1} parent=47 // pred_check_branch
        %614 = sbr.rel (%p612) target = $region76
      $region75: #{tpu_custom_call.1} parent=47 // pred_region
        %p615 = scmp.lt.s32.totalorder %s28, 1
        %s616 = scalar_select %p615, %s28, 1
        %s617 = smul.addr %s616, 4
        %s618 = smul.addr %s617, 8
        %s619 = scalar_lea.vmem %s10, %s618
      $region76: #{tpu_custom_call.1} parent=47 // pred_fallthru
        _
      // Predicated region
      $region77: #{tpu_custom_call.1} parent=47 // pred_check
        %p620 = pneg %p314
      $region78: #{tpu_custom_call.1} parent=47 // pred_check_branch
        %622 = sbr.rel (%p620) target = $region80
      $region79: #{tpu_custom_call.1} parent=47 // pred_region
        %p623 = scmp.lt.s32.totalorder %s28, 1
        %s624 = scalar_select %p623, %s28, 1
        %s625 = scalar_lea.vmem %s11, %s624
      $region80: #{tpu_custom_call.1} parent=47 // pred_fallthru
        _
      // Predicated region
      $region81: #{tpu_custom_call.1} parent=47 // pred_check
        %p626 = pneg %p340
      $region82: #{tpu_custom_call.1} parent=47 // pred_check_branch
        %628 = sbr.rel (%p626) target = $region84
      $region83: #{tpu_custom_call.1} parent=47 // pred_region
        %p629 = scmp.lt.s32.totalorder %s28, 1
        %s630 = scalar_select %p629, %s28, 1
        %s631 = smul.addr %s630, 16
        %s632 = smul.addr %s631, 8
        %s633 = scalar_lea.vmem %s12, %s632
      $region84: #{tpu_custom_call.1} parent=47 // pred_fallthru
        _
      // Predicated region
      $region85: #{tpu_custom_call.1} parent=47 // pred_check
        %p634 = pneg %p366
      $region86: #{tpu_custom_call.1} parent=47 // pred_check_branch
        %636 = sbr.rel (%p634) target = $region88
      $region87: #{tpu_custom_call.1} parent=47 // pred_region
        %p637 = scmp.lt.s32.totalorder %s28, 1
        %s638 = scalar_select %p637, %s28, 1
        %s639 = scalar_lea.vmem %s13, %s638
      $region88: #{tpu_custom_call.1} parent=47 // pred_fallthru
        _
      // Predicated region
      $region89: #{tpu_custom_call.1} parent=47 // pred_check
        %p640 = pneg %p392
      $region90: #{tpu_custom_call.1} parent=47 // pred_check_branch
        %642 = sbr.rel (%p640) target = $region92
      $region91: #{tpu_custom_call.1} parent=47 // pred_region
        %p643 = scmp.lt.s32.totalorder %s28, 1
        %s644 = scalar_select %p643, %s28, 1
        %s645 = scalar_lea.vmem %s14, %s644
      $region92: #{tpu_custom_call.1} parent=47 // pred_fallthru
        _
      // Predicated region
      $region93: #{tpu_custom_call.1} parent=47 // pred_check
        %p646 = pneg %p418
      $region94: #{tpu_custom_call.1} parent=47 // pred_check_branch
        %648 = sbr.rel (%p646) target = $region96
      $region95: #{tpu_custom_call.1} parent=47 // pred_region
        %p649 = scmp.lt.s32.totalorder %s28, 1
        %s650 = scalar_select %p649, %s28, 1
        %s651 = scalar_lea.vmem %s15, %s650
      $region96: #{tpu_custom_call.1} parent=47 // pred_fallthru
        _
    $region48: #{tpu_custom_call.1} parent=5 // pred_fallthru
      _
    %p652 = scmp.le.s32.totalorder 1, %s28
    %p653 = scmp.lt.s32.totalorder %s28, 3
    %p654 = pnand %p652, %p653
    %p655 = pneg %p654
    // Predicated region
    $region97: #{tpu_custom_call.1} parent=5 // pred_check
      _
    $region98: #{tpu_custom_call.1} parent=5 // pred_check_branch
      %657 = sbr.rel (%p654) target = $region100
    $region99: #{tpu_custom_call.1} parent=5 // pred_region
      %s658 = ssub.s32 %s28, 1
      %p659 = pneg %p49
      %p660 = pneg %p46
      %p661 = pneg %p70
      %p662 = pneg %p67
      %p663 = pneg %p91
      %p664 = pneg %p88
      %p665 = pneg %p112
      %p666 = pneg %p109
      %p667 = scmp.lt.s32.totalorder %s33, 1
      %s668 = scalar_select %p667, %s33, 1
      %s669 = smul.addr %s668, 4
      %s670 = smul.addr %s669, 8
      %s671 = scalar_lea.vmem %s4, %s670
      %p672 = pneg %p138
      %p673 = pneg %p135
      %p674 = scmp.lt.s32.totalorder %s33, 1
      %s675 = scalar_select %p674, %s33, 1
      %s676 = scalar_lea.vmem %s5, %s675
      %p677 = pneg %p164
      %p678 = pneg %p161
      %p679 = scmp.lt.s32.totalorder %s33, 1
      %s680 = scalar_select %p679, %s33, 1
      %s681 = smul.addr %s680, 4
      %s682 = smul.addr %s681, 8
      %s683 = scalar_lea.vmem %s6, %s682
      %p684 = pneg %p190
      %p685 = pneg %p187
      %p686 = scmp.lt.s32.totalorder %s33, 1
      %s687 = scalar_select %p686, %s33, 1
      %s688 = scalar_lea.vmem %s7, %s687
      %p689 = pneg %p216
      %p690 = pneg %p213
      %p691 = scmp.lt.s32.totalorder %s33, 1
      %s692 = scalar_select %p691, %s33, 1
      %s693 = scalar_lea.vmem %s8, %s692
      %p694 = pneg %p242
      %p695 = pneg %p239
      %p696 = scmp.lt.s32.totalorder %s33, 1
      %s697 = scalar_select %p696, %s33, 1
      %s698 = scalar_lea.vmem %s9, %s697
      %p699 = pneg %p268
      %p700 = pneg %p265
      %p701 = scmp.lt.s32.totalorder %s33, 1
      %s702 = scalar_select %p701, %s33, 1
      %s703 = smul.addr %s702, 4
      %s704 = smul.addr %s703, 8
      %s705 = scalar_lea.vmem %s10, %s704
      %p706 = pneg %p294
      %p707 = pneg %p291
      %p708 = scmp.lt.s32.totalorder %s33, 1
      %s709 = scalar_select %p708, %s33, 1
      %s710 = scalar_lea.vmem %s11, %s709
      %p711 = pneg %p320
      %p712 = pneg %p317
      %p713 = scmp.lt.s32.totalorder %s33, 1
      %s714 = scalar_select %p713, %s33, 1
      %s715 = smul.addr %s714, 16
      %s716 = smul.addr %s715, 8
      %s717 = scalar_lea.vmem %s12, %s716
      %p718 = pneg %p346
      %p719 = pneg %p343
      %p720 = scmp.lt.s32.totalorder %s33, 1
      %s721 = scalar_select %p720, %s33, 1
      %s722 = scalar_lea.vmem %s13, %s721
      %p723 = pneg %p372
      %p724 = pneg %p369
      %p725 = scmp.lt.s32.totalorder %s33, 1
      %s726 = scalar_select %p725, %s33, 1
      %s727 = scalar_lea.vmem %s14, %s726
      %p728 = pneg %p398
      %p729 = pneg %p395
      %p730 = scmp.lt.s32.totalorder %s33, 1
      %s731 = scalar_select %p730, %s33, 1
      %s732 = scalar_lea.vmem %s15, %s731
      %p733 = pneg %p424
      %p734 = pneg %p421
      %p735 = pneg %p445
      %p736 = pneg %p442
      %p737 = pneg %p466
      %p738 = pneg %p463
      %p739 = pneg %p487
      %p740 = pneg %p484
      %p741 = pneg %p508
      %p742 = pneg %p505
      %p743 = pneg %p529
      %p744 = pneg %p526
      %p745 = scmp.lt.s32.totalorder %s33, 1
      %s746 = scalar_select %p745, %s33, 1
      %s747 = smul.addr %s746, 4
      %s748 = smul.addr %s747, 8
      %s749 = scalar_lea.vmem %s4, %s748
      %p750 = scmp.lt.s32.totalorder %s33, 1
      %s751 = scalar_select %p750, %s33, 1
      %s752 = scalar_lea.vmem %s5, %s751
      %p753 = scmp.lt.s32.totalorder %s33, 1
      %s754 = scalar_select %p753, %s33, 1
      %s755 = smul.addr %s754, 4
      %s756 = smul.addr %s755, 8
      %s757 = scalar_lea.vmem %s6, %s756
      %p758 = scmp.lt.s32.totalorder %s33, 1
      %s759 = scalar_select %p758, %s33, 1
      %s760 = scalar_lea.vmem %s7, %s759
      %p761 = scmp.lt.s32.totalorder %s33, 1
      %s762 = scalar_select %p761, %s33, 1
      %s763 = scalar_lea.vmem %s8, %s762
      %p764 = scmp.lt.s32.totalorder %s33, 1
      %s765 = scalar_select %p764, %s33, 1
      %s766 = scalar_lea.vmem %s9, %s765
      %p767 = scmp.lt.s32.totalorder %s33, 1
      %s768 = scalar_select %p767, %s33, 1
      %s769 = smul.addr %s768, 4
      %s770 = smul.addr %s769, 8
      %s771 = scalar_lea.vmem %s10, %s770
      %p772 = scmp.lt.s32.totalorder %s33, 1
      %s773 = scalar_select %p772, %s33, 1
      %s774 = scalar_lea.vmem %s11, %s773
      %p775 = scmp.lt.s32.totalorder %s33, 1
      %s776 = scalar_select %p775, %s33, 1
      %s777 = smul.addr %s776, 16
      %s778 = smul.addr %s777, 8
      %s779 = scalar_lea.vmem %s12, %s778
      %p780 = scmp.lt.s32.totalorder %s33, 1
      %s781 = scalar_select %p780, %s33, 1
      %s782 = scalar_lea.vmem %s13, %s781
      %p783 = scmp.lt.s32.totalorder %s33, 1
      %s784 = scalar_select %p783, %s33, 1
      %s785 = scalar_lea.vmem %s14, %s784
      %p786 = scmp.lt.s32.totalorder %s33, 1
      %s787 = scalar_select %p786, %s33, 1
      %s788 = scalar_lea.vmem %s15, %s787
      %p789 = scmp.eq.s32.totalorder %s33, 0
      // Predicated region
      $region101: #{tpu_custom_call.1} parent=99 // pred_check
        %p790 = pneg %p789
      $region102: #{tpu_custom_call.1} parent=99 // pred_check_branch
        %792 = sbr.rel (%p790) target = $region104
      $region103: #{tpu_custom_call.1} parent=99 // pred_region
        %v793 = vld [vmem:[%s0] sm:$0xff]
        %v794 = vld [vmem:[%s0 + $0x8] sm:$0xff]
        %v795 = vld [vmem:[%s0 + $0x10] sm:$0xff]
        %v796 = vld [vmem:[%s3] sm:$0x3f]
        %v797 = vld [vmem:[%s1] sm:$0xff]
        %v798 = vld [vmem:[%s1 + $0x8] sm:$0xff]
        %v799 = vld [vmem:[%s1 + $0x10] sm:$0xff]
        %vm800 = vcmask 48128
        %v802 = vsel %vm800, %v793, 0
        %v805 = vsel %vm800, %v794, 0
        %v808 = vsel %vm800, %v795, 0
        %vm810 = vcmask 1045504
        %v812 = vsel %vm810, %v796, 0
        %814 = vmatprep.subr.mxu0 0.0
        %815 = vmatpush1.msra.mxu0 %v812
        %816 = vmatprep.subr.mxu0 0.0
        %817 = vmatpush1.msra.mxu0 0.0
        %818 = vmatprep.subr.mxu0 0.0
        %819 = vmatpush1.msra.mxu0 0.0
        %820 = vmatprep.subr.mxu0 0.0
        %821 = vmatpush1.msra.mxu0 0.0
        %822 = vmatprep.subr.mxu0 0.0
        %823 = vmatpush1.msra.mxu0 0.0
        %824 = vmatprep.subr.mxu0 0.0
        %825 = vmatpush1.msra.mxu0 0.0
        %826 = vmatprep.subr.mxu0 0.0
        %827 = vmatpush1.msra.mxu0 0.0
        %828 = vmatprep.subr.mxu0 0.0
        %829 = vmatpush1.msra.mxu0 0.0
        %830 = vmatprep.subr.mxu0 0.0
        %831 = vmatpush1.msra.mxu0 0.0
        %832 = vmatprep.subr.mxu0 0.0
        %833 = vmatpush1.msra.mxu0 0.0
        %834 = vmatprep.subr.mxu0 0.0
        %835 = vmatpush1.msra.mxu0 0.0
        %836 = vmatprep.subr.mxu0 0.0
        %837 = vmatpush1.msra.mxu0 0.0
        %838 = vmatprep.subr.mxu0 0.0
        %839 = vmatpush1.msra.mxu0 0.0
        %840 = vmatprep.subr.mxu0 0.0
        %841 = vmatpush1.msra.mxu0 0.0
        %842 = vmatprep.subr.mxu0 0.0
        %843 = vmatpush1.msra.mxu0 0.0
        %844 = vmatprep.subr.mxu0 0.0
        %845 = vmatpush1.msra.mxu0 0.0
        %846 = vmatprep.subr.mxu0 0.0
        %847 = vmatpush1.msra.mxu0 0.0
        %848 = vmatprep.subr.mxu0 0.0
        %849 = vmatpush1.msra.mxu0 0.0
        %850 = vmatprep.subr.mxu0 0.0
        %851 = vmatpush1.msra.mxu0 0.0
        %852 = vmatprep.subr.mxu0 0.0
        %853 = vmatpush1.msra.mxu0 0.0
        %854 = vmatprep.subr.mxu0 0.0
        %855 = vmatpush1.msra.mxu0 0.0
        %856 = vmatprep.subr.mxu0 0.0
        %857 = vmatpush1.msra.mxu0 0.0
        %858 = vmatprep.subr.mxu0 0.0
        %859 = vmatpush1.msra.mxu0 0.0
        %860 = vmatprep.subr.mxu0 0.0
        %861 = vmatpush1.msra.mxu0 0.0
        %862 = vmatprep.subr.mxu0 0.0
        %863 = vmatpush1.msra.mxu0 0.0
        %864 = vmatprep.subr.mxu0 0.0
        %865 = vmatpush1.msra.mxu0 0.0
        %866 = vmatprep.subr.mxu0 0.0
        %867 = vmatpush1.msra.mxu0 0.0
        %868 = vmatprep.subr.mxu0 0.0
        %869 = vmatpush1.msra.mxu0 0.0
        %870 = vmatprep.subr.mxu0 0.0
        %871 = vmatpush1.msra.mxu0 0.0
        %872 = vmatprep.subr.mxu0 0.0
        %873 = vmatpush1.msra.mxu0 0.0
        %874 = vmatprep.subr.mxu0 0.0
        %875 = vmatpush1.msra.mxu0 0.0
        %876 = vmatprep.subr.mxu0 0.0
        %877 = vmatpush1.msra.mxu0 0.0
        %878 = vmatprep.mubr.f32.mxu0 0.0
        %879 = vmatmul.mubr.f32.gmra.mrb[0].mxu0 %v802
        %v880 = vpop.f32.mrb[0].mxu0
        %v881 = vadd.f32 %v797, %v880
        %v882 = vpop.f32.mrb[0].mxu0
        %883 = vmatprep.mubr.f32.mxu0 0.0
        %884 = vmatmul.mubr.f32.gmra.mrb[0].mxu0 %v805
        %v885 = vpop.f32.mrb[0].mxu0
        %v886 = vadd.f32 %v798, %v885
        %v887 = vpop.f32.mrb[0].mxu0
        %888 = vmatprep.mubr.f32.mxu0 0.0
        %889 = vmatmul.mubr.f32.gmra.mrb[0].mxu0 %v808
        %v890 = vpop.f32.mrb[0].mxu0
        %v891 = vadd.f32 %v799, %v890
        %v892 = vpop.f32.mrb[0].mxu0
        %893 = vdwg.mxu0
        %vm894 = vcmask 261120
        %895 = vst.msk [vmem:[#allocation2] sm:$0xff] %vm894, %v881
        %896 = vst.msk [vmem:[#allocation2 + $0x8] sm:$0xff] %vm894, %v886
        %897 = vst.msk [vmem:[#allocation2 + $0x10] sm:$0xff] %vm894, %v891
      $region104: #{tpu_custom_call.1} parent=99 // pred_fallthru
        _
      %v898 = vld [vmem:[#allocation2] sm:$0xff]
      %v899 = vld [vmem:[#allocation2 + $0x8] sm:$0xff]
      %v900 = vld [vmem:[#allocation2 + $0x10] sm:$0xff]
      %v901 = vld [vmem:[%s749] sm:$0xff]
      %v902 = vld [vmem:[%s749 + $0x8] sm:$0xff]
      %v903 = vld [vmem:[%s749 + $0x10] sm:$0xff]
      %v904 = vld [vmem:[%s749 + $0x18] sm:$0xff]
      %v905 = vld [vmem:[%s752] sm:$0x1]
      %v907 = vlaneseq
      %v908 = vshrl.u32 %v907, 7
      %v909 = vsub.s32 0, %v908
      %v910 = vrot.slane %v905, %v909
      %vm912 = vcmask 261120
      %v914 = vsel %vm912, %v898, 0
      %v917 = vsel %vm912, %v899, 0
      %v920 = vsel %vm912, %v900, 0
      %922 = vmatprep.subr.mxu0 0.0
      %923 = vmatpush1.msra.mxu0 %v901
      %924 = vmatprep.subr.mxu0 0.0
      %925 = vmatpush1.msra.mxu0 %v902
      %926 = vmatprep.subr.mxu0 0.0
      %927 = vmatpush1.msra.mxu0 %v903
      %928 = vmatprep.subr.mxu0 0.0
      %929 = vmatpush1.msra.mxu0 %v904
      %930 = vmatprep.subr.mxu0 0.0
      %931 = vmatpush1.msra.mxu0 0.0
      %932 = vmatprep.subr.mxu0 0.0
      %933 = vmatpush1.msra.mxu0 0.0
      %934 = vmatprep.subr.mxu0 0.0
      %935 = vmatpush1.msra.mxu0 0.0
      %936 = vmatprep.subr.mxu0 0.0
      %937 = vmatpush1.msra.mxu0 0.0
      %938 = vmatprep.subr.mxu0 0.0
      %939 = vmatpush1.msra.mxu0 0.0
      %940 = vmatprep.subr.mxu0 0.0
      %941 = vmatpush1.msra.mxu0 0.0
      %942 = vmatprep.subr.mxu0 0.0
      %943 = vmatpush1.msra.mxu0 0.0
      %944 = vmatprep.subr.mxu0 0.0
      %945 = vmatpush1.msra.mxu0 0.0
      %946 = vmatprep.subr.mxu0 0.0
      %947 = vmatpush1.msra.mxu0 0.0
      %948 = vmatprep.subr.mxu0 0.0
      %949 = vmatpush1.msra.mxu0 0.0
      %950 = vmatprep.subr.mxu0 0.0
      %951 = vmatpush1.msra.mxu0 0.0
      %952 = vmatprep.subr.mxu0 0.0
      %953 = vmatpush1.msra.mxu0 0.0
      %954 = vmatprep.subr.mxu0 0.0
      %955 = vmatpush1.msra.mxu0 0.0
      %956 = vmatprep.subr.mxu0 0.0
      %957 = vmatpush1.msra.mxu0 0.0
      %958 = vmatprep.subr.mxu0 0.0
      %959 = vmatpush1.msra.mxu0 0.0
      %960 = vmatprep.subr.mxu0 0.0
      %961 = vmatpush1.msra.mxu0 0.0
      %962 = vmatprep.subr.mxu0 0.0
      %963 = vmatpush1.msra.mxu0 0.0
      %964 = vmatprep.subr.mxu0 0.0
      %965 = vmatpush1.msra.mxu0 0.0
      %966 = vmatprep.subr.mxu0 0.0
      %967 = vmatpush1.msra.mxu0 0.0
      %968 = vmatprep.subr.mxu0 0.0
      %969 = vmatpush1.msra.mxu0 0.0
      %970 = vmatprep.subr.mxu0 0.0
      %971 = vmatpush1.msra.mxu0 0.0
      %972 = vmatprep.subr.mxu0 0.0
      %973 = vmatpush1.msra.mxu0 0.0
      %974 = vmatprep.subr.mxu0 0.0
      %975 = vmatpush1.msra.mxu0 0.0
      %976 = vmatprep.subr.mxu0 0.0
      %977 = vmatpush1.msra.mxu0 0.0
      %978 = vmatprep.subr.mxu0 0.0
      %979 = vmatpush1.msra.mxu0 0.0
      %980 = vmatprep.subr.mxu0 0.0
      %981 = vmatpush1.msra.mxu0 0.0
      %982 = vmatprep.subr.mxu0 0.0
      %983 = vmatpush1.msra.mxu0 0.0
      %984 = vmatprep.subr.mxu0 0.0
      %985 = vmatpush1.msra.mxu0 0.0
      %986 = vmatprep.mubr.f32.mxu0 0.0
      %987 = vmatmul.mubr.f32.gmra.mrb[0].mxu0 %v914
      %v988 = vpop.f32.mrb[0].mxu0
      %v989 = vadd.f32 %v910, %v988
      %v990 = vpop.f32.mrb[0].mxu0
      %991 = vmatprep.mubr.f32.mxu0 0.0
      %992 = vmatmul.mubr.f32.gmra.mrb[0].mxu0 %v917
      %v993 = vpop.f32.mrb[0].mxu0
      %v994 = vadd.f32 %v910, %v993
      %v995 = vpop.f32.mrb[0].mxu0
      %996 = vmatprep.mubr.f32.mxu0 0.0
      %997 = vmatmul.mubr.f32.gmra.mrb[0].mxu0 %v920
      %v998 = vpop.f32.mrb[0].mxu0
      %v999 = vadd.f32 %v910, %v998
      %v1000 = vpop.f32.mrb[0].mxu0
      %1001 = vdwg.mxu0
      %1005 = vrot.lane.b32.xlu0 %v989, 96
      %v1006 = vpop.permute.xlu0 %1005
      %1007 = vrot.lane.b32.xlu0 %v994, 96
      %v1008 = vpop.permute.xlu0 %1007
      %1009 = vrot.lane.b32.xlu0 %v999, 96
      %v1010 = vpop.permute.xlu0 %1009
      %v1011 = vsel %vm912, %v989, 0
      %v1013 = vsel %vm912, %v994, 0
      %v1015 = vsel %vm912, %v999, 0
      %v1017 = vsel %vm912, %v1006, 0
      %v1019 = vsel %vm912, %v1008, 0
      %v1021 = vsel %vm912, %v1010, 0
      %1023 = vmatprep.subr.mxu0 0.0
      %1024 = vmatpush1.xpose.msra.mxu0 %v1017
      %1025 = vmatprep.subr.mxu0 0.0
      %1026 = vmatpush1.xpose.msra.mxu0 %v1019
      %1027 = vmatprep.subr.mxu0 0.0
      %1028 = vmatpush1.xpose.msra.mxu0 %v1021
      %1029 = vmatprep.subr.mxu0 0.0
      %1030 = vmatpush1.xpose.msra.mxu0 0.0
      %1031 = vmatprep.subr.mxu0 0.0
      %1032 = vmatpush1.xpose.msra.mxu0 0.0
      %1033 = vmatprep.subr.mxu0 0.0
      %1034 = vmatpush1.xpose.msra.mxu0 0.0
      %1035 = vmatprep.subr.mxu0 0.0
      %1036 = vmatpush1.xpose.msra.mxu0 0.0
      %1037 = vmatprep.subr.mxu0 0.0
      %1038 = vmatpush1.xpose.msra.mxu0 0.0
      %1039 = vmatprep.subr.mxu0 0.0
      %1040 = vmatpush1.xpose.msra.mxu0 0.0
      %1041 = vmatprep.subr.mxu0 0.0
      %1042 = vmatpush1.xpose.msra.mxu0 0.0
      %1043 = vmatprep.subr.mxu0 0.0
      %1044 = vmatpush1.xpose.msra.mxu0 0.0
      %1045 = vmatprep.subr.mxu0 0.0
      %1046 = vmatpush1.xpose.msra.mxu0 0.0
      %1047 = vmatprep.subr.mxu0 0.0
      %1048 = vmatpush1.xpose.msra.mxu0 0.0
      %1049 = vmatprep.subr.mxu0 0.0
      %1050 = vmatpush1.xpose.msra.mxu0 0.0
      %1051 = vmatprep.subr.mxu0 0.0
      %1052 = vmatpush1.xpose.msra.mxu0 0.0
      %1053 = vmatprep.subr.mxu0 0.0
      %1054 = vmatpush1.xpose.msra.mxu0 0.0
      %1055 = vmatprep.subr.mxu0 0.0
      %1056 = vmatpush1.xpose.msra.mxu0 0.0
      %1057 = vmatprep.subr.mxu0 0.0
      %1058 = vmatpush1.xpose.msra.mxu0 0.0
      %1059 = vmatprep.subr.mxu0 0.0
      %1060 = vmatpush1.xpose.msra.mxu0 0.0
      %1061 = vmatprep.subr.mxu0 0.0
      %1062 = vmatpush1.xpose.msra.mxu0 0.0
      %1063 = vmatprep.subr.mxu0 0.0
      %1064 = vmatpush1.xpose.msra.mxu0 0.0
      %1065 = vmatprep.subr.mxu0 0.0
      %1066 = vmatpush1.xpose.msra.mxu0 0.0
      %1067 = vmatprep.subr.mxu0 0.0
      %1068 = vmatpush1.xpose.msra.mxu0 0.0
      %1069 = vmatprep.subr.mxu0 0.0
      %1070 = vmatpush1.xpose.msra.mxu0 0.0
      %1071 = vmatprep.subr.mxu0 0.0
      %1072 = vmatpush1.xpose.msra.mxu0 0.0
      %1073 = vmatprep.subr.mxu0 0.0
      %1074 = vmatpush1.xpose.msra.mxu0 0.0
      %1075 = vmatprep.subr.mxu0 0.0
      %1076 = vmatpush1.xpose.msra.mxu0 0.0
      %1077 = vmatprep.subr.mxu0 0.0
      %1078 = vmatpush1.xpose.msra.mxu0 0.0
      %1079 = vmatprep.subr.mxu0 0.0
      %1080 = vmatpush1.xpose.msra.mxu0 0.0
      %1081 = vmatprep.subr.mxu0 0.0
      %1082 = vmatpush1.xpose.msra.mxu0 0.0
      %1083 = vmatprep.subr.mxu0 0.0
      %1084 = vmatpush1.xpose.msra.mxu0 0.0
      %1085 = vmatprep.subr.mxu0 0.0
      %1086 = vmatpush1.xpose.msra.mxu0 0.0
      %1087 = vmatprep.mubr.f32.mxu0 0.0
      %1088 = vmatmul.mubr.f32.gmra.mrb[0].mxu0 %v1011
      %v1089 = vpop.f32.mrb[0].mxu0
      %v1090 = vadd.f32 0.0, %v1089
      %v1091 = vpop.f32.mrb[0].mxu0
      %1092 = vmatprep.mubr.f32.mxu0 0.0
      %1093 = vmatmul.mubr.f32.gmra.mrb[0].mxu0 %v1013
      %v1094 = vpop.f32.mrb[0].mxu0
      %v1095 = vadd.f32 0.0, %v1094
      %v1096 = vpop.f32.mrb[0].mxu0
      %1097 = vmatprep.mubr.f32.mxu0 0.0
      %1098 = vmatmul.mubr.f32.gmra.mrb[0].mxu0 %v1015
      %v1099 = vpop.f32.mrb[0].mxu0
      %v1100 = vadd.f32 0.0, %v1099
      %v1101 = vpop.f32.mrb[0].mxu0
      %1102 = vdwg.mxu0
      %v1103 = vmul.f32 %v1090, 0.17677669
      %v1104 = vmul.f32 %v1095, 0.17677669
      %v1105 = vmul.f32 %v1100, 0.17677669
      %v1106 = vld [vmem:[%s2] sm:$0xff]
      %v1107 = vld [vmem:[%s2 + $0x8] sm:$0xff]
      %v1108 = vld [vmem:[%s2 + $0x10] sm:$0xff]
      %v1109 = vadd.f32 %v1103, %v1106
      %v1110 = vadd.f32 %v1104, %v1107
      %v1111 = vadd.f32 %v1105, %v1108
      %vm1112 = vcmask 195584
      %v1113 = vsel %vm1112, %v1109, -inf
      %1114 = vmax.xlane.f32.xlu0 %v1113
      %v1115 = vpop.xlane.xlu0 %1114
      %v1116 = vsel %vm1112, %v1110, -inf
      %1117 = vmax.xlane.f32.xlu0 %v1116
      %v1118 = vpop.xlane.xlu0 %1117
      %v1119 = vsel %vm1112, %v1111, -inf
      %1120 = vmax.xlane.f32.xlu0 %v1119
      %v1121 = vpop.xlane.xlu0 %1120
      %v1122 = vsub.f32 %v1109, %v1115
      %v1123 = vsub.f32 %v1110, %v1118
      %v1124 = vsub.f32 %v1111, %v1121
      %v1125 = vmul.f32 %v1122, 1.442695
      %v1126 = vpow.pop %v1125
      %v1127 = vmul.f32 %v1123, 1.442695
      %v1128 = vpow.pop %v1127
      %v1129 = vmul.f32 %v1124, 1.442695
      %v1130 = vpow.pop %v1129
      %v1131 = vsel %vm1112, %v1126, 0.0
      %1132 = vadd.xlane.f32.xlu0 %v1131
      %v1133 = vpop.xlane.xlu0 %1132
      %v1134 = vsel %vm1112, %v1128, 0.0
      %1135 = vadd.xlane.f32.xlu0 %v1134
      %v1136 = vpop.xlane.xlu0 %1135
      %v1137 = vsel %vm1112, %v1130, 0.0
      %1138 = vadd.xlane.f32.xlu0 %v1137
      %v1139 = vpop.xlane.xlu0 %1138
      %v1140 = vrcp.pop %v1133
      %v1141 = vrcp.pop %v1136
      %v1142 = vrcp.pop %v1139
      %v1143 = vmul.f32 %v1126, %v1140
      %v1144 = vmul.f32 %v1128, %v1141
      %v1145 = vmul.f32 %v1130, %v1142
      %1146 = vrot.lane.b32.xlu0 %v989, 64
      %v1147 = vpop.permute.xlu0 %1146
      %1148 = vrot.lane.b32.xlu0 %v994, 64
      %v1149 = vpop.permute.xlu0 %1148
      %1150 = vrot.lane.b32.xlu0 %v999, 64
      %v1151 = vpop.permute.xlu0 %1150
      %v1156 = vsel %vm1112, %v1143, 0
      %v1159 = vsel %vm1112, %v1144, 0
      %v1162 = vsel %vm1112, %v1145, 0
      %1164 = vmatprep.subr.mxu0 0.0
      %1165 = vmatpush1.msra.mxu0 %v1147
      %1166 = vmatprep.subr.mxu0 0.0
      %1167 = vmatpush1.msra.mxu0 %v1149
      %1168 = vmatprep.subr.mxu0 0.0
      %1169 = vmatpush1.msra.mxu0 %v1151
      %1170 = vmatprep.subr.mxu0 0.0
      %1171 = vmatpush1.msra.mxu0 0.0
      %1172 = vmatprep.subr.mxu0 0.0
      %1173 = vmatpush1.msra.mxu0 0.0
      %1174 = vmatprep.subr.mxu0 0.0
      %1175 = vmatpush1.msra.mxu0 0.0
      %1176 = vmatprep.subr.mxu0 0.0
      %1177 = vmatpush1.msra.mxu0 0.0
      %1178 = vmatprep.subr.mxu0 0.0
      %1179 = vmatpush1.msra.mxu0 0.0
      %1180 = vmatprep.subr.mxu0 0.0
      %1181 = vmatpush1.msra.mxu0 0.0
      %1182 = vmatprep.subr.mxu0 0.0
      %1183 = vmatpush1.msra.mxu0 0.0
      %1184 = vmatprep.subr.mxu0 0.0
      %1185 = vmatpush1.msra.mxu0 0.0
      %1186 = vmatprep.subr.mxu0 0.0
      %1187 = vmatpush1.msra.mxu0 0.0
      %1188 = vmatprep.subr.mxu0 0.0
      %1189 = vmatpush1.msra.mxu0 0.0
      %1190 = vmatprep.subr.mxu0 0.0
      %1191 = vmatpush1.msra.mxu0 0.0
      %1192 = vmatprep.subr.mxu0 0.0
      %1193 = vmatpush1.msra.mxu0 0.0
      %1194 = vmatprep.subr.mxu0 0.0
      %1195 = vmatpush1.msra.mxu0 0.0
      %1196 = vmatprep.subr.mxu0 0.0
      %1197 = vmatpush1.msra.mxu0 0.0
      %1198 = vmatprep.subr.mxu0 0.0
      %1199 = vmatpush1.msra.mxu0 0.0
      %1200 = vmatprep.subr.mxu0 0.0
      %1201 = vmatpush1.msra.mxu0 0.0
      %1202 = vmatprep.subr.mxu0 0.0
      %1203 = vmatpush1.msra.mxu0 0.0
      %1204 = vmatprep.subr.mxu0 0.0
      %1205 = vmatpush1.msra.mxu0 0.0
      %1206 = vmatprep.subr.mxu0 0.0
      %1207 = vmatpush1.msra.mxu0 0.0
      %1208 = vmatprep.subr.mxu0 0.0
      %1209 = vmatpush1.msra.mxu0 0.0
      %1210 = vmatprep.subr.mxu0 0.0
      %1211 = vmatpush1.msra.mxu0 0.0
      %1212 = vmatprep.subr.mxu0 0.0
      %1213 = vmatpush1.msra.mxu0 0.0
      %1214 = vmatprep.subr.mxu0 0.0
      %1215 = vmatpush1.msra.mxu0 0.0
      %1216 = vmatprep.subr.mxu0 0.0
      %1217 = vmatpush1.msra.mxu0 0.0
      %1218 = vmatprep.subr.mxu0 0.0
      %1219 = vmatpush1.msra.mxu0 0.0
      %1220 = vmatprep.subr.mxu0 0.0
      %1221 = vmatpush1.msra.mxu0 0.0
      %1222 = vmatprep.subr.mxu0 0.0
      %1223 = vmatpush1.msra.mxu0 0.0
      %1224 = vmatprep.subr.mxu0 0.0
      %1225 = vmatpush1.msra.mxu0 0.0
      %1226 = vmatprep.subr.mxu0 0.0
      %1227 = vmatpush1.msra.mxu0 0.0
      %1228 = vmatprep.mubr.f32.mxu0 0.0
      %1229 = vmatmul.mubr.f32.gmra.mrb[0].mxu0 %v1156
      %v1230 = vpop.f32.mrb[0].mxu0
      %v1231 = vadd.f32 0.0, %v1230
      %v1232 = vpop.f32.mrb[0].mxu0
      %1233 = vmatprep.mubr.f32.mxu0 0.0
      %1234 = vmatmul.mubr.f32.gmra.mrb[0].mxu0 %v1159
      %v1235 = vpop.f32.mrb[0].mxu0
      %v1236 = vadd.f32 0.0, %v1235
      %v1237 = vpop.f32.mrb[0].mxu0
      %1238 = vmatprep.mubr.f32.mxu0 0.0
      %1239 = vmatmul.mubr.f32.gmra.mrb[0].mxu0 %v1162
      %v1240 = vpop.f32.mrb[0].mxu0
      %v1241 = vadd.f32 0.0, %v1240
      %v1242 = vpop.f32.mrb[0].mxu0
      %1243 = vdwg.mxu0
      %v1244 = vld [vmem:[%s757] sm:$0xff]
      %v1245 = vld [vmem:[%s757 + $0x8] sm:$0xff]
      %v1246 = vld [vmem:[%s757 + $0x10] sm:$0xff]
      %v1247 = vld [vmem:[%s757 + $0x18] sm:$0xff]
      %v1248 = vld [vmem:[%s760] sm:$0x1]
      %v1250 = vlaneseq
      %v1251 = vshrl.u32 %v1250, 7
      %v1252 = vsub.s32 0, %v1251
      %v1253 = vrot.slane %v1248, %v1252
      %v1256 = vsel %vm912, %v1231, 0
      %v1259 = vsel %vm912, %v1236, 0
      %v1262 = vsel %vm912, %v1241, 0
      %1264 = vmatprep.subr.mxu0 0.0
      %1265 = vmatpush1.msra.mxu0 %v1244
      %1266 = vmatprep.subr.mxu0 0.0
      %1267 = vmatpush1.msra.mxu0 %v1245
      %1268 = vmatprep.subr.mxu0 0.0
      %1269 = vmatpush1.msra.mxu0 %v1246
      %1270 = vmatprep.subr.mxu0 0.0
      %1271 = vmatpush1.msra.mxu0 %v1247
      %1272 = vmatprep.subr.mxu0 0.0
      %1273 = vmatpush1.msra.mxu0 0.0
      %1274 = vmatprep.subr.mxu0 0.0
      %1275 = vmatpush1.msra.mxu0 0.0
      %1276 = vmatprep.subr.mxu0 0.0
      %1277 = vmatpush1.msra.mxu0 0.0
      %1278 = vmatprep.subr.mxu0 0.0
      %1279 = vmatpush1.msra.mxu0 0.0
      %1280 = vmatprep.subr.mxu0 0.0
      %1281 = vmatpush1.msra.mxu0 0.0
      %1282 = vmatprep.subr.mxu0 0.0
      %1283 = vmatpush1.msra.mxu0 0.0
      %1284 = vmatprep.subr.mxu0 0.0
      %1285 = vmatpush1.msra.mxu0 0.0
      %1286 = vmatprep.subr.mxu0 0.0
      %1287 = vmatpush1.msra.mxu0 0.0
      %1288 = vmatprep.subr.mxu0 0.0
      %1289 = vmatpush1.msra.mxu0 0.0
      %1290 = vmatprep.subr.mxu0 0.0
      %1291 = vmatpush1.msra.mxu0 0.0
      %1292 = vmatprep.subr.mxu0 0.0
      %1293 = vmatpush1.msra.mxu0 0.0
      %1294 = vmatprep.subr.mxu0 0.0
      %1295 = vmatpush1.msra.mxu0 0.0
      %1296 = vmatprep.subr.mxu0 0.0
      %1297 = vmatpush1.msra.mxu0 0.0
      %1298 = vmatprep.subr.mxu0 0.0
      %1299 = vmatpush1.msra.mxu0 0.0
      %1300 = vmatprep.subr.mxu0 0.0
      %1301 = vmatpush1.msra.mxu0 0.0
      %1302 = vmatprep.subr.mxu0 0.0
      %1303 = vmatpush1.msra.mxu0 0.0
      %1304 = vmatprep.subr.mxu0 0.0
      %1305 = vmatpush1.msra.mxu0 0.0
      %1306 = vmatprep.subr.mxu0 0.0
      %1307 = vmatpush1.msra.mxu0 0.0
      %1308 = vmatprep.subr.mxu0 0.0
      %1309 = vmatpush1.msra.mxu0 0.0
      %1310 = vmatprep.subr.mxu0 0.0
      %1311 = vmatpush1.msra.mxu0 0.0
      %1312 = vmatprep.subr.mxu0 0.0
      %1313 = vmatpush1.msra.mxu0 0.0
      %1314 = vmatprep.subr.mxu0 0.0
      %1315 = vmatpush1.msra.mxu0 0.0
      %1316 = vmatprep.subr.mxu0 0.0
      %1317 = vmatpush1.msra.mxu0 0.0
      %1318 = vmatprep.subr.mxu0 0.0
      %1319 = vmatpush1.msra.mxu0 0.0
      %1320 = vmatprep.subr.mxu0 0.0
      %1321 = vmatpush1.msra.mxu0 0.0
      %1322 = vmatprep.subr.mxu0 0.0
      %1323 = vmatpush1.msra.mxu0 0.0
      %1324 = vmatprep.subr.mxu0 0.0
      %1325 = vmatpush1.msra.mxu0 0.0
      %1326 = vmatprep.subr.mxu0 0.0
      %1327 = vmatpush1.msra.mxu0 0.0
      %1328 = vmatprep.mubr.f32.mxu0 0.0
      %1329 = vmatmul.mubr.f32.gmra.mrb[0].mxu0 %v1256
      %v1330 = vpop.f32.mrb[0].mxu0
      %v1331 = vadd.f32 %v1253, %v1330
      %v1332 = vpop.f32.mrb[0].mxu0
      %1333 = vmatprep.mubr.f32.mxu0 0.0
      %1334 = vmatmul.mubr.f32.gmra.mrb[0].mxu0 %v1259
      %v1335 = vpop.f32.mrb[0].mxu0
      %v1336 = vadd.f32 %v1253, %v1335
      %v1337 = vpop.f32.mrb[0].mxu0
      %1338 = vmatprep.mubr.f32.mxu0 0.0
      %1339 = vmatmul.mubr.f32.gmra.mrb[0].mxu0 %v1262
      %v1340 = vpop.f32.mrb[0].mxu0
      %v1341 = vadd.f32 %v1253, %v1340
      %v1342 = vpop.f32.mrb[0].mxu0
      %1343 = vdwg.mxu0
      %v1344 = vadd.f32 %v898, %v1331
      %v1345 = vadd.f32 %v899, %v1336
      %v1346 = vadd.f32 %v900, %v1341
      %v1347 = vld [vmem:[%s763] sm:$0x1]
      %v1348 = vld [vmem:[%s766] sm:$0x1]
      %v1349 = vsel %vm912, %v1344, 0.0
      %1350 = vadd.xlane.f32.xlu0 %v1349
      %v1351 = vpop.xlane.xlu0 %1350
      %v1352 = vsel %vm912, %v1345, 0.0
      %1353 = vadd.xlane.f32.xlu0 %v1352
      %v1354 = vpop.xlane.xlu0 %1353
      %v1355 = vsel %vm912, %v1346, 0.0
      %1356 = vadd.xlane.f32.xlu0 %v1355
      %v1357 = vpop.xlane.xlu0 %1356
      %v1358 = vrcp.pop 32.0
      %v1359 = vmul.f32 %v1351, %v1358
      %v1360 = vmul.f32 %v1354, %v1358
      %v1361 = vmul.f32 %v1357, %v1358
      %v1362 = vsub.f32 %v1344, %v1359
      %v1363 = vsub.f32 %v1345, %v1360
      %v1364 = vsub.f32 %v1346, %v1361
      %v1365 = vmul.f32 %v1362, %v1362
      %v1366 = vmul.f32 %v1363, %v1363
      %v1367 = vmul.f32 %v1364, %v1364
      %v1368 = vsel %vm912, %v1365, 0.0
      %1369 = vadd.xlane.f32.xlu0 %v1368
      %v1370 = vpop.xlane.xlu0 %1369
      %v1371 = vsel %vm912, %v1366, 0.0
      %1372 = vadd.xlane.f32.xlu0 %v1371
      %v1373 = vpop.xlane.xlu0 %1372
      %v1374 = vsel %vm912, %v1367, 0.0
      %1375 = vadd.xlane.f32.xlu0 %v1374
      %v1376 = vpop.xlane.xlu0 %1375
      %v1377 = vmul.f32 %v1370, %v1358
      %v1378 = vmul.f32 %v1373, %v1358
      %v1379 = vmul.f32 %v1376, %v1358
      %v1380 = vadd.f32 %v1377, 1e-05
      %v1381 = vadd.f32 %v1378, 1e-05
      %v1382 = vadd.f32 %v1379, 1e-05
      %v1383 = vrsqrt.pop %v1380
      %v1384 = vrsqrt.pop %v1381
      %v1385 = vrsqrt.pop %v1382
      %v1386 = vmul.f32 %v1362, %v1383
      %v1387 = vmul.f32 %v1363, %v1384
      %v1388 = vmul.f32 %v1364, %v1385
      %v1390 = vlaneseq
      %v1391 = vshrl.u32 %v1390, 7
      %v1392 = vsub.s32 0, %v1391
      %v1393 = vrot.slane %v1347, %v1392
      %v1395 = vmul.f32 %v1386, %v1393
      %v1396 = vmul.f32 %v1387, %v1393
      %v1397 = vmul.f32 %v1388, %v1393
      %v1399 = vlaneseq
      %v1400 = vshrl.u32 %v1399, 7
      %v1401 = vsub.s32 0, %v1400
      %v1402 = vrot.slane %v1348, %v1401
      %v1404 = vadd.f32 %v1395, %v1402
      %v1405 = vadd.f32 %v1396, %v1402
      %v1406 = vadd.f32 %v1397, %v1402
      %v1407 = vld [vmem:[%s771] sm:$0xff]
      %v1408 = vld [vmem:[%s771 + $0x8] sm:$0xff]
      %v1409 = vld [vmem:[%s771 + $0x10] sm:$0xff]
      %v1410 = vld [vmem:[%s771 + $0x18] sm:$0xff]
      %v1411 = vld [vmem:[%s774] sm:$0x1]
      %v1413 = vlaneseq
      %v1414 = vshrl.u32 %v1413, 7
      %v1415 = vsub.s32 0, %v1414
      %v1416 = vrot.slane %v1411, %v1415
      %v1419 = vsel %vm912, %v1404, 0
      %v1422 = vsel %vm912, %v1405, 0
      %v1425 = vsel %vm912, %v1406, 0
      %1427 = vmatprep.subr.mxu0 0.0
      %1428 = vmatpush1.msra.mxu0 %v1407
      %1429 = vmatprep.subr.mxu0 0.0
      %1430 = vmatpush1.msra.mxu0 %v1408
      %1431 = vmatprep.subr.mxu0 0.0
      %1432 = vmatpush1.msra.mxu0 %v1409
      %1433 = vmatprep.subr.mxu0 0.0
      %1434 = vmatpush1.msra.mxu0 %v1410
      %1435 = vmatprep.subr.mxu0 0.0
      %1436 = vmatpush1.msra.mxu0 0.0
      %1437 = vmatprep.subr.mxu0 0.0
      %1438 = vmatpush1.msra.mxu0 0.0
      %1439 = vmatprep.subr.mxu0 0.0
      %1440 = vmatpush1.msra.mxu0 0.0
      %1441 = vmatprep.subr.mxu0 0.0
      %1442 = vmatpush1.msra.mxu0 0.0
      %1443 = vmatprep.subr.mxu0 0.0
      %1444 = vmatpush1.msra.mxu0 0.0
      %1445 = vmatprep.subr.mxu0 0.0
      %1446 = vmatpush1.msra.mxu0 0.0
      %1447 = vmatprep.subr.mxu0 0.0
      %1448 = vmatpush1.msra.mxu0 0.0
      %1449 = vmatprep.subr.mxu0 0.0
      %1450 = vmatpush1.msra.mxu0 0.0
      %1451 = vmatprep.subr.mxu0 0.0
      %1452 = vmatpush1.msra.mxu0 0.0
      %1453 = vmatprep.subr.mxu0 0.0
      %1454 = vmatpush1.msra.mxu0 0.0
      %1455 = vmatprep.subr.mxu0 0.0
      %1456 = vmatpush1.msra.mxu0 0.0
      %1457 = vmatprep.subr.mxu0 0.0
      %1458 = vmatpush1.msra.mxu0 0.0
      %1459 = vmatprep.subr.mxu0 0.0
      %1460 = vmatpush1.msra.mxu0 0.0
      %1461 = vmatprep.subr.mxu0 0.0
      %1462 = vmatpush1.msra.mxu0 0.0
      %1463 = vmatprep.subr.mxu0 0.0
      %1464 = vmatpush1.msra.mxu0 0.0
      %1465 = vmatprep.subr.mxu0 0.0
      %1466 = vmatpush1.msra.mxu0 0.0
      %1467 = vmatprep.subr.mxu0 0.0
      %1468 = vmatpush1.msra.mxu0 0.0
      %1469 = vmatprep.subr.mxu0 0.0
      %1470 = vmatpush1.msra.mxu0 0.0
      %1471 = vmatprep.subr.mxu0 0.0
      %1472 = vmatpush1.msra.mxu0 0.0
      %1473 = vmatprep.subr.mxu0 0.0
      %1474 = vmatpush1.msra.mxu0 0.0
      %1475 = vmatprep.subr.mxu0 0.0
      %1476 = vmatpush1.msra.mxu0 0.0
      %1477 = vmatprep.subr.mxu0 0.0
      %1478 = vmatpush1.msra.mxu0 0.0
      %1479 = vmatprep.subr.mxu0 0.0
      %1480 = vmatpush1.msra.mxu0 0.0
      %1481 = vmatprep.subr.mxu0 0.0
      %1482 = vmatpush1.msra.mxu0 0.0
      %1483 = vmatprep.subr.mxu0 0.0
      %1484 = vmatpush1.msra.mxu0 0.0
      %1485 = vmatprep.subr.mxu0 0.0
      %1486 = vmatpush1.msra.mxu0 0.0
      %1487 = vmatprep.subr.mxu0 0.0
      %1488 = vmatpush1.msra.mxu0 0.0
      %1489 = vmatprep.subr.mxu0 0.0
      %1490 = vmatpush1.msra.mxu0 0.0
      %1491 = vmatprep.mubr.f32.mxu0 0.0
      %1492 = vmatmul.mubr.f32.gmra.mrb[0].mxu0 %v1419
      %v1493 = vpop.f32.mrb[0].mxu0
      %v1494 = vadd.f32 %v1416, %v1493
      %v1495 = vpop.f32.mrb[0].mxu0
      %1496 = vmatprep.mubr.f32.mxu0 0.0
      %1497 = vmatmul.mubr.f32.gmra.mrb[0].mxu0 %v1422
      %v1498 = vpop.f32.mrb[0].mxu0
      %v1499 = vadd.f32 %v1416, %v1498
      %v1500 = vpop.f32.mrb[0].mxu0
      %1501 = vmatprep.mubr.f32.mxu0 0.0
      %1502 = vmatmul.mubr.f32.gmra.mrb[0].mxu0 %v1425
      %v1503 = vpop.f32.mrb[0].mxu0
      %v1504 = vadd.f32 %v1416, %v1503
      %v1505 = vpop.f32.mrb[0].mxu0
      %1506 = vdwg.mxu0
      %v1507 = vmul.f32 %v1494, 0.5
      %v1508 = vmul.f32 %v1499, 0.5
      %v1509 = vmul.f32 %v1504, 0.5
      %v1510 = vmul.f32 %v1494, 0.70710677
      %v1511 = vmul.f32 %v1499, 0.70710677
      %v1512 = vmul.f32 %v1504, 0.70710677
      %v1513 = verf.f32.pop %v1510
      %v1514 = verf.f32.pop %v1511
      %v1515 = verf.f32.pop %v1512
      %v1516 = vadd.f32 %v1513, 1.0
      %v1517 = vadd.f32 %v1514, 1.0
      %v1518 = vadd.f32 %v1515, 1.0
      %v1519 = vmul.f32 %v1507, %v1516
      %v1520 = vmul.f32 %v1508, %v1517
      %v1521 = vmul.f32 %v1509, %v1518
      %v1522 = vld [vmem:[%s779] sm:$0xff]
      %v1523 = vld [vmem:[%s779 + $0x8] sm:$0xff]
      %v1524 = vld [vmem:[%s779 + $0x10] sm:$0xff]
      %v1525 = vld [vmem:[%s779 + $0x18] sm:$0xff]
      %v1526 = vld [vmem:[%s779 + $0x20] sm:$0xff]
      %v1527 = vld [vmem:[%s779 + $0x28] sm:$0xff]
      %v1528 = vld [vmem:[%s779 + $0x30] sm:$0xff]
      %v1529 = vld [vmem:[%s779 + $0x38] sm:$0xff]
      %v1530 = vld [vmem:[%s779 + $0x40] sm:$0xff]
      %v1531 = vld [vmem:[%s779 + $0x48] sm:$0xff]
      %v1532 = vld [vmem:[%s779 + $0x50] sm:$0xff]
      %v1533 = vld [vmem:[%s779 + $0x58] sm:$0xff]
      %v1534 = vld [vmem:[%s779 + $0x60] sm:$0xff]
      %v1535 = vld [vmem:[%s779 + $0x68] sm:$0xff]
      %v1536 = vld [vmem:[%s779 + $0x70] sm:$0xff]
      %v1537 = vld [vmem:[%s779 + $0x78] sm:$0xff]
      %v1538 = vld [vmem:[%s782] sm:$0x1]
      %v1540 = vlaneseq
      %v1541 = vshrl.u32 %v1540, 7
      %v1542 = vsub.s32 0, %v1541
      %v1543 = vrot.slane %v1538, %v1542
      %1545 = vmatprep.subr.mxu0 0.0
      %1546 = vmatpush1.msra.mxu0 %v1522
      %1547 = vmatprep.subr.mxu0 0.0
      %1548 = vmatpush1.msra.mxu0 %v1523
      %1549 = vmatprep.subr.mxu0 0.0
      %1550 = vmatpush1.msra.mxu0 %v1524
      %1551 = vmatprep.subr.mxu0 0.0
      %1552 = vmatpush1.msra.mxu0 %v1525
      %1553 = vmatprep.subr.mxu0 0.0
      %1554 = vmatpush1.msra.mxu0 %v1526
      %1555 = vmatprep.subr.mxu0 0.0
      %1556 = vmatpush1.msra.mxu0 %v1527
      %1557 = vmatprep.subr.mxu0 0.0
      %1558 = vmatpush1.msra.mxu0 %v1528
      %1559 = vmatprep.subr.mxu0 0.0
      %1560 = vmatpush1.msra.mxu0 %v1529
      %1561 = vmatprep.subr.mxu0 0.0
      %1562 = vmatpush1.msra.mxu0 %v1530
      %1563 = vmatprep.subr.mxu0 0.0
      %1564 = vmatpush1.msra.mxu0 %v1531
      %1565 = vmatprep.subr.mxu0 0.0
      %1566 = vmatpush1.msra.mxu0 %v1532
      %1567 = vmatprep.subr.mxu0 0.0
      %1568 = vmatpush1.msra.mxu0 %v1533
      %1569 = vmatprep.subr.mxu0 0.0
      %1570 = vmatpush1.msra.mxu0 %v1534
      %1571 = vmatprep.subr.mxu0 0.0
      %1572 = vmatpush1.msra.mxu0 %v1535
      %1573 = vmatprep.subr.mxu0 0.0
      %1574 = vmatpush1.msra.mxu0 %v1536
      %1575 = vmatprep.subr.mxu0 0.0
      %1576 = vmatpush1.msra.mxu0 %v1537
      %1577 = vmatprep.subr.mxu0 0.0
      %1578 = vmatpush1.msra.mxu0 0.0
      %1579 = vmatprep.subr.mxu0 0.0
      %1580 = vmatpush1.msra.mxu0 0.0
      %1581 = vmatprep.subr.mxu0 0.0
      %1582 = vmatpush1.msra.mxu0 0.0
      %1583 = vmatprep.subr.mxu0 0.0
      %1584 = vmatpush1.msra.mxu0 0.0
      %1585 = vmatprep.subr.mxu0 0.0
      %1586 = vmatpush1.msra.mxu0 0.0
      %1587 = vmatprep.subr.mxu0 0.0
      %1588 = vmatpush1.msra.mxu0 0.0
      %1589 = vmatprep.subr.mxu0 0.0
      %1590 = vmatpush1.msra.mxu0 0.0
      %1591 = vmatprep.subr.mxu0 0.0
      %1592 = vmatpush1.msra.mxu0 0.0
      %1593 = vmatprep.subr.mxu0 0.0
      %1594 = vmatpush1.msra.mxu0 0.0
      %1595 = vmatprep.subr.mxu0 0.0
      %1596 = vmatpush1.msra.mxu0 0.0
      %1597 = vmatprep.subr.mxu0 0.0
      %1598 = vmatpush1.msra.mxu0 0.0
      %1599 = vmatprep.subr.mxu0 0.0
      %1600 = vmatpush1.msra.mxu0 0.0
      %1601 = vmatprep.subr.mxu0 0.0
      %1602 = vmatpush1.msra.mxu0 0.0
      %1603 = vmatprep.subr.mxu0 0.0
      %1604 = vmatpush1.msra.mxu0 0.0
      %1605 = vmatprep.subr.mxu0 0.0
      %1606 = vmatpush1.msra.mxu0 0.0
      %1607 = vmatprep.subr.mxu0 0.0
      %1608 = vmatpush1.msra.mxu0 0.0
      %1609 = vmatprep.mubr.f32.mxu0 0.0
      %1610 = vmatmul.mubr.f32.gmra.mrb[0].mxu0 %v1519
      %v1611 = vpop.f32.mrb[0].mxu0
      %v1612 = vadd.f32 %v1543, %v1611
      %v1613 = vpop.f32.mrb[0].mxu0
      %1614 = vmatprep.mubr.f32.mxu0 0.0
      %1615 = vmatmul.mubr.f32.gmra.mrb[0].mxu0 %v1520
      %v1616 = vpop.f32.mrb[0].mxu0
      %v1617 = vadd.f32 %v1543, %v1616
      %v1618 = vpop.f32.mrb[0].mxu0
      %1619 = vmatprep.mubr.f32.mxu0 0.0
      %1620 = vmatmul.mubr.f32.gmra.mrb[0].mxu0 %v1521
      %v1621 = vpop.f32.mrb[0].mxu0
      %v1622 = vadd.f32 %v1543, %v1621
      %v1623 = vpop.f32.mrb[0].mxu0
      %1624 = vdwg.mxu0
      %v1625 = vadd.f32 %v1404, %v1612
      %v1626 = vadd.f32 %v1405, %v1617
      %v1627 = vadd.f32 %v1406, %v1622
      %v1628 = vld [vmem:[%s785] sm:$0x1]
      %v1629 = vld [vmem:[%s788] sm:$0x1]
      %v1630 = vsel %vm912, %v1625, 0.0
      %1631 = vadd.xlane.f32.xlu0 %v1630
      %v1632 = vpop.xlane.xlu0 %1631
      %v1633 = vsel %vm912, %v1626, 0.0
      %1634 = vadd.xlane.f32.xlu0 %v1633
      %v1635 = vpop.xlane.xlu0 %1634
      %v1636 = vsel %vm912, %v1627, 0.0
      %1637 = vadd.xlane.f32.xlu0 %v1636
      %v1638 = vpop.xlane.xlu0 %1637
      %v1639 = vmul.f32 %v1632, %v1358
      %v1640 = vmul.f32 %v1635, %v1358
      %v1641 = vmul.f32 %v1638, %v1358
      %v1642 = vsub.f32 %v1625, %v1639
      %v1643 = vsub.f32 %v1626, %v1640
      %v1644 = vsub.f32 %v1627, %v1641
      %v1645 = vmul.f32 %v1642, %v1642
      %v1646 = vmul.f32 %v1643, %v1643
      %v1647 = vmul.f32 %v1644, %v1644
      %v1648 = vsel %vm912, %v1645, 0.0
      %1649 = vadd.xlane.f32.xlu0 %v1648
      %v1650 = vpop.xlane.xlu0 %1649
      %v1651 = vsel %vm912, %v1646, 0.0
      %1652 = vadd.xlane.f32.xlu0 %v1651
      %v1653 = vpop.xlane.xlu0 %1652
      %v1654 = vsel %vm912, %v1647, 0.0
      %1655 = vadd.xlane.f32.xlu0 %v1654
      %v1656 = vpop.xlane.xlu0 %1655
      %v1657 = vmul.f32 %v1650, %v1358
      %v1658 = vmul.f32 %v1653, %v1358
      %v1659 = vmul.f32 %v1656, %v1358
      %v1660 = vadd.f32 %v1657, 1e-05
      %v1661 = vadd.f32 %v1658, 1e-05
      %v1662 = vadd.f32 %v1659, 1e-05
      %v1663 = vrsqrt.pop %v1660
      %v1664 = vrsqrt.pop %v1661
      %v1665 = vrsqrt.pop %v1662
      %v1666 = vmul.f32 %v1642, %v1663
      %v1667 = vmul.f32 %v1643, %v1664
      %v1668 = vmul.f32 %v1644, %v1665
      %v1670 = vlaneseq
      %v1671 = vshrl.u32 %v1670, 7
      %v1672 = vsub.s32 0, %v1671
      %v1673 = vrot.slane %v1628, %v1672
      %v1675 = vmul.f32 %v1666, %v1673
      %v1676 = vmul.f32 %v1667, %v1673
      %v1677 = vmul.f32 %v1668, %v1673
      %v1679 = vlaneseq
      %v1680 = vshrl.u32 %v1679, 7
      %v1681 = vsub.s32 0, %v1680
      %v1682 = vrot.slane %v1629, %v1681
      %v1684 = vadd.f32 %v1675, %v1682
      %v1685 = vadd.f32 %v1676, %v1682
      %v1686 = vadd.f32 %v1677, %v1682
      %1687 = vst.msk [vmem:[#allocation2] sm:$0xff] %vm912, %v1684
      %1688 = vst.msk [vmem:[#allocation2 + $0x8] sm:$0xff] %vm912, %v1685
      %1689 = vst.msk [vmem:[#allocation2 + $0x10] sm:$0xff] %vm912, %v1686
      %p1690 = scmp.eq.s32.totalorder %s33, 1
      // Predicated region
      $region105: #{tpu_custom_call.1} parent=99 // pred_check
        %p1691 = pneg %p1690
      $region106: #{tpu_custom_call.1} parent=99 // pred_check_branch
        %1693 = sbr.rel (%p1691) target = $region108
      $region107: #{tpu_custom_call.1} parent=99 // pred_region
        %v1694 = vld [vmem:[%s16] sm:$0x1]
        %v1695 = vld [vmem:[%s17] sm:$0x1]
        %v1696 = vsel %vm912, %v1684, 0.0
        %1697 = vadd.xlane.f32.xlu0 %v1696
        %v1698 = vpop.xlane.xlu0 %1697
        %v1699 = vsel %vm912, %v1685, 0.0
        %1700 = vadd.xlane.f32.xlu0 %v1699
        %v1701 = vpop.xlane.xlu0 %1700
        %v1702 = vsel %vm912, %v1686, 0.0
        %1703 = vadd.xlane.f32.xlu0 %v1702
        %v1704 = vpop.xlane.xlu0 %1703
        %v1705 = vmul.f32 %v1698, %v1358
        %v1706 = vmul.f32 %v1701, %v1358
        %v1707 = vmul.f32 %v1704, %v1358
        %v1708 = vsub.f32 %v1684, %v1705
        %v1709 = vsub.f32 %v1685, %v1706
        %v1710 = vsub.f32 %v1686, %v1707
        %v1711 = vmul.f32 %v1708, %v1708
        %v1712 = vmul.f32 %v1709, %v1709
        %v1713 = vmul.f32 %v1710, %v1710
        %v1714 = vsel %vm912, %v1711, 0.0
        %1715 = vadd.xlane.f32.xlu0 %v1714
        %v1716 = vpop.xlane.xlu0 %1715
        %v1717 = vsel %vm912, %v1712, 0.0
        %1718 = vadd.xlane.f32.xlu0 %v1717
        %v1719 = vpop.xlane.xlu0 %1718
        %v1720 = vsel %vm912, %v1713, 0.0
        %1721 = vadd.xlane.f32.xlu0 %v1720
        %v1722 = vpop.xlane.xlu0 %1721
        %v1723 = vmul.f32 %v1716, %v1358
        %v1724 = vmul.f32 %v1719, %v1358
        %v1725 = vmul.f32 %v1722, %v1358
        %v1726 = vadd.f32 %v1723, 1e-05
        %v1727 = vadd.f32 %v1724, 1e-05
        %v1728 = vadd.f32 %v1725, 1e-05
        %v1729 = vrsqrt.pop %v1726
        %v1730 = vrsqrt.pop %v1727
        %v1731 = vrsqrt.pop %v1728
        %v1732 = vmul.f32 %v1708, %v1729
        %v1733 = vmul.f32 %v1709, %v1730
        %v1734 = vmul.f32 %v1710, %v1731
        %v1736 = vlaneseq
        %v1737 = vshrl.u32 %v1736, 7
        %v1738 = vsub.s32 0, %v1737
        %v1739 = vrot.slane %v1694, %v1738
        %v1741 = vmul.f32 %v1732, %v1739
        %v1742 = vmul.f32 %v1733, %v1739
        %v1743 = vmul.f32 %v1734, %v1739
        %v1745 = vlaneseq
        %v1746 = vshrl.u32 %v1745, 7
        %v1747 = vsub.s32 0, %v1746
        %v1748 = vrot.slane %v1695, %v1747
        %v1750 = vadd.f32 %v1741, %v1748
        %v1751 = vadd.f32 %v1742, %v1748
        %v1752 = vadd.f32 %v1743, %v1748
        %v1753 = vld [vmem:[%s18] sm:$0x1]
        %v1755 = vlaneseq
        %v1756 = vshrl.u32 %v1755, 7
        %v1757 = vsub.s32 0, %v1756
        %v1758 = vrot.slane %v1753, %v1757
        %v1760 = vmul.f32 %v1750, %v1758
        %v1761 = vmul.f32 %v1751, %v1758
        %v1762 = vmul.f32 %v1752, %v1758
        %v1763 = vsel %vm912, %v1760, 0.0
        %1764 = vadd.xlane.f32.xlu0 %v1763
        %v1765 = vpop.xlane.xlu0 %1764
        %v1766 = vsel %vm912, %v1761, 0.0
        %1767 = vadd.xlane.f32.xlu0 %v1766
        %v1768 = vpop.xlane.xlu0 %1767
        %v1769 = vsel %vm912, %v1762, 0.0
        %1770 = vadd.xlane.f32.xlu0 %v1769
        %v1771 = vpop.xlane.xlu0 %1770
        %v1772 = vld [vmem:[#allocation3] sm:$0x1]
        %v1774 = vlaneseq
        %v1775 = vshrl.u32 %v1774, 7
        %v1776 = vsub.s32 0, %v1775
        %v1777 = vrot.slane %v1772, %v1776
        %v1779 = vadd.f32 %v1765, %v1777
        %v1780 = vadd.f32 %v1768, %v1777
        %v1781 = vadd.f32 %v1771, %v1777
        %v1782 = vxor.u32 %v1779, 2147483648
        %v1783 = vxor.u32 %v1780, 2147483648
        %v1784 = vxor.u32 %v1781, 2147483648
        %v1785 = vmul.f32 %v1782, 1.442695
        %v1786 = vpow.pop %v1785
        %v1787 = vmul.f32 %v1783, 1.442695
        %v1788 = vpow.pop %v1787
        %v1789 = vmul.f32 %v1784, 1.442695
        %v1790 = vpow.pop %v1789
        %v1791 = vadd.f32 %v1786, 1.0
        %v1792 = vadd.f32 %v1788, 1.0
        %v1793 = vadd.f32 %v1790, 1.0
        %v1794 = vrcp.pop %v1791
        %v1795 = vmul.f32 1.0, %v1794
        %v1796 = vrcp.pop %v1792
        %v1797 = vmul.f32 1.0, %v1796
        %v1798 = vrcp.pop %v1793
        %v1799 = vmul.f32 1.0, %v1798
        %vm1800 = vcmask 7168
        %1801 = vst.msk [vmem:[%s20] sm:$0xff] %vm1800, %v1795
        %1802 = vst.msk [vmem:[%s20 + $0x8] sm:$0xff] %vm1800, %v1797
        %1803 = vst.msk [vmem:[%s20 + $0x10] sm:$0xff] %vm1800, %v1799
      $region108: #{tpu_custom_call.1} parent=99 // pred_fallthru
        _
      // Predicated region
      $region109: #{tpu_custom_call.1} parent=99 // pred_check
        %p1804 = pneg %p526
      $region110: #{tpu_custom_call.1} parent=99 // pred_check_branch
        %1806 = sbr.rel (%p1804) target = $region112
      $region111: #{tpu_custom_call.1} parent=99 // pred_region
        _
      $region112: #{tpu_custom_call.1} parent=99 // pred_fallthru
        _
      // Predicated region
      $region113: #{tpu_custom_call.1} parent=99 // pred_check
        %p1807 = pneg %p526
      $region114: #{tpu_custom_call.1} parent=99 // pred_check_branch
        %1809 = sbr.rel (%p1807) target = $region116
      $region115: #{tpu_custom_call.1} parent=99 // pred_region
        _
      $region116: #{tpu_custom_call.1} parent=99 // pred_fallthru
        _
    $region100: #{tpu_custom_call.1} parent=5 // pred_fallthru
      _
    %p1810 = scmp.le.s32.totalorder 2, %s28
    // Predicated region
    $region117: #{tpu_custom_call.1} parent=5 // pred_check
      %p1811 = pneg %p1810
    $region118: #{tpu_custom_call.1} parent=5 // pred_check_branch
      %1813 = sbr.rel (%p1811) target = $region120
    $region119: #{tpu_custom_call.1} parent=5 // pred_region
      %s1814 = ssub.s32 %s28, 2
    $region120: #{tpu_custom_call.1} parent=5 // pred_fallthru
      _
  $region6: #{tpu_custom_call.1} parent=0 // loop_footer
    %s32 = sadd.s32 1, %s28
  $region7: #{tpu_custom_call.1} parent=0 // loop_footer_branch
    %27 = sbr.rel target = $region3
  $region8: #{tpu_custom_call.1} parent=0 // loop_exit
    _

</llo_original>
